<compile_context>
chip_gen: v7x
topology: tpu7x:2x2x1
jax: 0.10.0
libtpu: 0.0.40
codegen_flags: <defaults>
</compile_context>

<pallas_src>
import functools

import jax
import jax.numpy as jnp
from jax import lax
from jax.experimental import pallas as pl
from jax.experimental.pallas import tpu as pltpu


def _round_up(x, m):
    return ((x + m - 1) // m) * m


def _device_kind():
    try:
        return jax.devices()[0].device_kind.lower()
    except Exception:  # pragma: no cover - defensive only
        return ""


def _has_bf16_vpu_eup():
    """bf16 elementwise/transcendental support (v6e / v7x); v5e and older: no."""
    kind = _device_kind()
    return any(tag in kind for tag in ("v6", "v7", "7x"))


def _res_conv_self_attn_kernel(
    x_ref,       # (1, C, N_pad) input block (also the residual skip)
    gmat_ref,    # (C, C)    group-membership matrix / (N_true * group_size)
    gnw_ref,     # (C, 1)    GroupNorm gamma
    gnb_ref,     # (C, 1)    GroupNorm beta
    wqkv_ref,    # (3C, C)   fused qkv conv weight (q rows pre-scaled by C**-0.5)
    bqkv_ref,    # (3C, 1)   fused qkv conv bias   (q rows pre-scaled), f32
    wout_ref,    # (C, C)    out conv weight
    bout_ref,    # (C, 1)    out conv bias, f32
    o_ref,       # (1, C, TQ) output block
    k_scr,       # (C, N_pad) cached keys   (compute dtype)
    v_scr,       # (C, N_pad) cached values (compute dtype)
    scale_scr,   # (C, 1) folded GroupNorm scale
    shift_scr,   # (C, 1) folded GroupNorm shift
    *,
    eps: float,
    n_valid: int,
    q_tile: int,
    exp_dtype,
):
    cdt = wqkv_ref.dtype          # MXU operand dtype (bf16 default, f32 verify)
    c = gmat_ref.shape[0]
    n_pad = x_ref.shape[2]
    qi = pl.program_id(1)

    # -------- per-batch prologue (q-tile 0): GroupNorm affine + k/v cache ----
    @pl.when(qi == 0)
    def _prologue():
        x = x_ref[0]                                       # (C, N_pad) f32
        s = jnp.sum(x, axis=1, keepdims=True)              # (C, 1)
        ss = jnp.sum(x * x, axis=1, keepdims=True)         # (C, 1)
        # Fused group-stat matvecs: one (C,C)@(C,2) matmul instead of two.
        stats = jnp.dot(gmat_ref[...], jnp.concatenate([s, ss], axis=1),
                        preferred_element_type=jnp.float32)  # (C, 2)
        mean = stats[:, 0:1]
        var = stats[:, 1:2] - mean * mean
        inv = lax.rsqrt(var + eps)
        scale_c = inv * gnw_ref[...]
        shift_c = gnb_ref[...] - mean * scale_c
        scale_scr[...] = scale_c
        shift_scr[...] = shift_c
        # k / v projection over the full spatial extent, cached in scratch.
        xn = (x * scale_c + shift_c).astype(cdt)
        kv = (jnp.dot(wqkv_ref[c:3 * c, :], xn,
                      preferred_element_type=jnp.float32)
              + bqkv_ref[c:3 * c, :]).astype(cdt)          # one cast, (2C, N)
        k_scr[...] = kv[0:c, :]
        v_scr[...] = kv[c:2 * c, :]

    # -------- per-query-tile attention -------------------------------------
    qoff = pl.multiple_of(qi * q_tile, q_tile)
    x_t = x_ref[0, :, pl.ds(qoff, q_tile)]                 # (C, TQ) f32 (residual)
    xn_t = (x_t * scale_scr[...] + shift_scr[...]).astype(cdt)
    q_t = (jnp.dot(wqkv_ref[0:c, :], xn_t,
                   preferred_element_type=jnp.float32)
           + bqkv_ref[0:c, :]).astype(cdt)                 # (C, TQ), pre-scaled

    # score_t[j, i] = sum_c k[c, j] * q[c, i]  -> (N_key, TQ): softmax stats
    # land in a lane-dense (1, TQ) row.
    score_t = lax.dot_general(
        k_scr[...], q_t,
        dimension_numbers=(((0,), (0,)), ((), ())),
        preferred_element_type=jnp.float32,
    )
    if n_valid < n_pad:   # mask padded key positions (static branch)
        key_idx = lax.broadcasted_iota(jnp.int32, (n_pad, 1), 0)
        score_t = jnp.where(key_idx < n_valid, score_t, jnp.float32(-1e30))

    m = jnp.max(score_t, axis=0, keepdims=True)            # (1, TQ)
    # exp in bf16 on v6e/v7x (bf16 EUP + drops one (N,TQ) cast pass), f32 on v5e.
    p_t = jnp.exp((score_t - m).astype(exp_dtype))         # unnormalized numer.
    l = jnp.sum(p_t, axis=0, keepdims=True, dtype=jnp.float32)  # (1, TQ)

    # Deferred normalization: v @ p_t, then multiply by approx reciprocal (EUP).
    attn = jnp.dot(v_scr[...], p_t.astype(cdt),
                   preferred_element_type=jnp.float32)     # (C, TQ)
    attn = attn * pl.reciprocal(l, approx=True)

    # -------- 1x1 out projection + residual ---------------------------------
    out = jnp.dot(wout_ref[...], attn.astype(cdt),
                  preferred_element_type=jnp.float32) + bout_ref[...]
    o_ref[0] = (out + x_t).astype(o_ref.dtype)


def res_conv_self_attn(x_nchw, params, *, n_groups, eps=1e-5,
                       compute_dtype=jnp.bfloat16, q_tile=None):
    """x_nchw: (B, C, H, W) float32.  compute_dtype: MXU operand dtype
    (bfloat16 default for throughput; pass jnp.float32 for verification)."""
    b, c, h, w = x_nchw.shape
    n = h * w
    n_pad = max(_round_up(n, 128), 128)          # lane-dense blocks
    if q_tile is None:
        if n_pad <= 512:
            q_tile = n_pad
        else:
            q_tile = next(t for t in (512, 256, 128) if n_pad % t == 0)
    assert n_pad % q_tile == 0 and (q_tile % 128 == 0 or q_tile == n_pad)
    n_q_tiles = n_pad // q_tile

    scale = float(c) ** (-0.5)
    gs = c // n_groups

    # NCHW -> (B, C, N): contiguous reshape only; pad N to a lane multiple.
    x_bcn = x_nchw.reshape(b, c, n).astype(jnp.float32)
    if n_pad != n:
        x_bcn = jnp.pad(x_bcn, ((0, 0), (0, 0), (0, n_pad - n)))

    gn_w = params["gn_w"].reshape(c, 1).astype(jnp.float32)
    gn_b = params["gn_b"].reshape(c, 1).astype(jnp.float32)

    # Fused qkv weight (3C, C); attention scale baked into the q rows so the
    # kernel never multiplies the (N, TQ) score tensor.
    row_scale = jnp.concatenate(
        [jnp.full((c, 1), scale, jnp.float32),
         jnp.ones((2 * c, 1), jnp.float32)], axis=0)
    wqkv = (params["w_qkv"].reshape(3 * c, c).astype(jnp.float32)
            * row_scale).astype(compute_dtype)
    bqkv = params["b_qkv"].reshape(3 * c, 1).astype(jnp.float32) * row_scale
    wout = params["w_out"].reshape(c, c).astype(compute_dtype)
    bout = params["b_out"].reshape(c, 1).astype(jnp.float32)

    # Loop-invariant group-membership matrix, pre-divided by the true
    # normalization count (padded zeros contribute nothing to the sums).
    gid = jnp.arange(c, dtype=jnp.int32) // gs
    gmat = (gid[:, None] == gid[None, :]).astype(jnp.float32) / float(n * gs)

    bf16_compute = jnp.dtype(compute_dtype) == jnp.dtype(jnp.bfloat16)
    exp_dtype = jnp.bfloat16 if (bf16_compute and _has_bf16_vpu_eup()) else jnp.float32

    kernel = functools.partial(
        _res_conv_self_attn_kernel, eps=float(eps), n_valid=n,
        q_tile=q_tile, exp_dtype=exp_dtype)

    # ---- VMEM budget derived from actual block/scratch/temp sizes ----------
    w_bytes = jnp.dtype(compute_dtype).itemsize
    e_bytes = jnp.dtype(exp_dtype).itemsize
    vmem_need = (
        2 * c * n_pad * 4                       # x block (double-buffered)
        + 2 * c * q_tile * 4                    # out block (double-buffered)
        + 2 * (c * c * 4 + 4 * c * c * w_bytes)  # gmat + wqkv + wout (x2 bufs)
        + 2 * 8 * c * 128 * 4                   # biases / gn params (lane pad)
        + 2 * c * n_pad * w_bytes               # k/v scratch
        + n_pad * q_tile * (4 + e_bytes + w_bytes)  # score + p_t temporaries
        + 6 * c * max(n_pad, q_tile) * 4        # misc temporaries headroom
    )
    kind = _device_kind()
    vmem_cap = (56 << 20) if ("v7" in kind or "7x" in kind) else (100 << 20)
    vmem_limit = int(min(vmem_cap, max(32 << 20, int(vmem_need * 1.25))))

    cost = pl.CostEstimate(
        flops=int(b * (2 * n_pad * c * 3 * c     # qkv projections
                       + 4 * n_pad * n_pad * c   # score + attn @ v
                       + 2 * n_pad * c * c)),    # out projection
        transcendentals=int(b * (n_pad * n_pad + n_pad + c)),
        bytes_accessed=int(2 * b * c * n_pad * 4
                           + (wqkv.size + wout.size) * w_bytes
                           + (bqkv.size + bout.size + 2 * c + c * c) * 4),
    )

    const2 = lambda bi, qi: (0, 0)
    out_bcn = pl.pallas_call(
        kernel,
        out_shape=jax.ShapeDtypeStruct((b, c, n_pad), jnp.float32),
        grid_spec=pltpu.PrefetchScalarGridSpec(
            num_scalar_prefetch=0,
            grid=(b, n_q_tiles),
            in_specs=[
                pl.BlockSpec((1, c, n_pad), lambda bi, qi: (bi, 0, 0)),  # x
                pl.BlockSpec((c, c), const2),        # gmat
                pl.BlockSpec((c, 1), const2),        # gn gamma
                pl.BlockSpec((c, 1), const2),        # gn beta
                pl.BlockSpec((3 * c, c), const2),    # wqkv (fused, q pre-scaled)
                pl.BlockSpec((3 * c, 1), const2),    # bqkv
                pl.BlockSpec((c, c), const2),        # wout
                pl.BlockSpec((c, 1), const2),        # bout
            ],
            out_specs=pl.BlockSpec((1, c, q_tile), lambda bi, qi: (bi, 0, qi)),
            scratch_shapes=[
                pltpu.VMEM((c, n_pad), compute_dtype),   # cached k
                pltpu.VMEM((c, n_pad), compute_dtype),   # cached v
                pltpu.VMEM((c, 1), jnp.float32),         # folded GN scale
                pltpu.VMEM((c, 1), jnp.float32),         # folded GN shift
            ],
        ),
        compiler_params=pltpu.CompilerParams(
            dimension_semantics=("parallel", "arbitrary"),
            vmem_limit_bytes=vmem_limit,
        ),
        cost_estimate=cost,
    )(x_bcn, gmat, gn_w, gn_b, wqkv, bqkv, wout, bout)

    if n_pad != n:
        out_bcn = out_bcn[:, :, :n]
    return out_bcn.reshape(b, c, h, w)


def res_conv_self_attn_ref(x, params, *, n_groups, eps=1e-5):
    """Pure-JAX reference mirroring the PyTorch forward, NCHW."""
    b, c, h, w = x.shape
    n = h * w
    skip = x
    xg = x.reshape(b, n_groups, c // n_groups, h, w)
    mean = jnp.mean(xg, axis=(2, 3, 4), keepdims=True)
    var = jnp.mean((xg - mean) ** 2, axis=(2, 3, 4), keepdims=True)
    xn = ((xg - mean) / jnp.sqrt(var + eps)).reshape(b, c, h, w)
    xn = xn * params["gn_w"].reshape(1, c, 1, 1) + params["gn_b"].reshape(1, c, 1, 1)
    qkv = jnp.einsum("oc,bchw->bohw", params["w_qkv"], xn) + params["b_qkv"].reshape(1, 3 * c, 1, 1)
    q, k, v = jnp.split(qkv, 3, axis=1)
    q = q.reshape(b, c, n); k = k.reshape(b, c, n); v = v.reshape(b, c, n)
    score = jnp.einsum("bci,bcj->bij", q, k) * (float(c) ** (-0.5))
    attn = jax.nn.softmax(score, axis=2)
    o = jnp.einsum("bij,bcj->bci", attn, v).reshape(b, c, h, w)
    o = jnp.einsum("oc,bchw->bohw", params["w_out"], o) + params["b_out"].reshape(1, c, 1, 1)
    return o + skip


if __name__ == "__main__":
    B, C, H, W = 2, 32, 16, 16      # N = H*W = 256 -> lane-dense blocks
    N_GROUPS = 4

    key = jax.random.PRNGKey(0)
    ks = jax.random.split(key, 7)
    x = jax.random.normal(ks[0], (B, C, H, W), dtype=jnp.float32)
    params = {
        "gn_w": jax.random.normal(ks[1], (C,), dtype=jnp.float32) * 0.1 + 1.0,
        "gn_b": jax.random.normal(ks[2], (C,), dtype=jnp.float32) * 0.1,
        # Conv2d(C, 3C, 1) weight is (3C, C, 1, 1); stored squeezed (3C, C).
        "w_qkv": jax.random.normal(ks[3], (3 * C, C), dtype=jnp.float32) * (C ** -0.5),
        "b_qkv": jax.random.normal(ks[4], (3 * C,), dtype=jnp.float32) * 0.05,
        "w_out": jax.random.normal(ks[5], (C, C), dtype=jnp.float32) * (C ** -0.5),
        "b_out": jax.random.normal(ks[6], (C,), dtype=jnp.float32) * 0.05,
    }

    ref = jax.block_until_ready(res_conv_self_attn_ref(x, params, n_groups=N_GROUPS))

    # f32 MXU operands, q_tile=128 (two query tiles -> exercises the flash-style
    # axis + k/v scratch reuse).  Tolerance covers the EUP approx reciprocal.
    out_f32 = jax.block_until_ready(
        res_conv_self_attn(x, params, n_groups=N_GROUPS,
                           compute_dtype=jnp.float32, q_tile=128))
    assert out_f32.shape == (B, C, H, W)
    max_err_f32 = float(jnp.max(jnp.abs(out_f32 - ref)))
    assert jnp.allclose(out_f32, ref, atol=5e-3, rtol=5e-3), max_err_f32

    # Default bf16 MXU path (throughput path on v5e/v6e/v7x): sanity check only.
    out_bf16 = jax.block_until_ready(
        res_conv_self_attn(x, params, n_groups=N_GROUPS))
    assert out_bf16.shape == (B, C, H, W)
    assert bool(jnp.isfinite(out_bf16).all())
    assert float(jnp.max(jnp.abs(out_bf16 - ref))) < 0.5

    print("KERNEL_OK")
</pallas_src>

<mosaic_0001>
module attributes {stable_mosaic.version = 11 : i64} {
  func.func @_res_conv_self_attn_kernel(%arg0: i32, %arg1: i32, %arg2: memref<1x32x256xf32, #tpu.memory_space<vmem>>, %arg3: memref<32x32xf32, #tpu.memory_space<vmem>>, %arg4: memref<32x1xf32, #tpu.memory_space<vmem>>, %arg5: memref<32x1xf32, #tpu.memory_space<vmem>>, %arg6: memref<96x32xf32, #tpu.memory_space<vmem>>, %arg7: memref<96x1xf32, #tpu.memory_space<vmem>>, %arg8: memref<32x32xf32, #tpu.memory_space<vmem>>, %arg9: memref<32x1xf32, #tpu.memory_space<vmem>>, %arg10: memref<1x32x128xf32, #tpu.memory_space<vmem>>, %arg11: memref<32x256xf32, #tpu.memory_space<vmem>>, %arg12: memref<32x256xf32, #tpu.memory_space<vmem>>, %arg13: memref<32x1xf32, #tpu.memory_space<vmem>>, %arg14: memref<32x1xf32, #tpu.memory_space<vmem>>) attributes {dimension_semantics = [#tpu.dimension_semantics<parallel>, #tpu.dimension_semantics<arbitrary>], iteration_bounds = array<i64: 2, 2>, scalar_prefetch = 0 : i64, scratch_operands = 4 : i64, tpu.core_type = #tpu.core_type<tc>, window_params = [{transform_indices = @transform_0, window_bounds = array<i64: 1, 32, 256>}, {pipeline_mode = #tpu.pipeline_mode<synchronous>, transform_indices = @transform_1, window_bounds = array<i64: 32, 32>}, {pipeline_mode = #tpu.pipeline_mode<synchronous>, transform_indices = @transform_2, window_bounds = array<i64: 32, 1>}, {pipeline_mode = #tpu.pipeline_mode<synchronous>, transform_indices = @transform_3, window_bounds = array<i64: 32, 1>}, {pipeline_mode = #tpu.pipeline_mode<synchronous>, transform_indices = @transform_4, window_bounds = array<i64: 96, 32>}, {pipeline_mode = #tpu.pipeline_mode<synchronous>, transform_indices = @transform_5, window_bounds = array<i64: 96, 1>}, {pipeline_mode = #tpu.pipeline_mode<synchronous>, transform_indices = @transform_6, window_bounds = array<i64: 32, 32>}, {pipeline_mode = #tpu.pipeline_mode<synchronous>, transform_indices = @transform_7, window_bounds = array<i64: 32, 1>}, {transform_indices = @transform_8, window_bounds = array<i64: 1, 32, 128>}]} {
    %c0_i32 = arith.constant 0 : i32
    %0 = arith.cmpi eq, %arg1, %c0_i32 : i32
    %1 = arith.extui %0 : i1 to i32
    %c0_i32_0 = arith.constant 0 : i32
    %2 = arith.cmpi ne, %1, %c0_i32_0 : i32
    scf.if %2 {
      %c0_26 = arith.constant 0 : index
      %c0_27 = arith.constant 0 : index
      %c0_28 = arith.constant 0 : index
      %42 = vector.load %arg2[%c0_26, %c0_27, %c0_28] : memref<1x32x256xf32, #tpu.memory_space<vmem>>, vector<1x32x256xf32>
      %43 = vector.shape_cast %42 : vector<1x32x256xf32> to vector<32x256xf32>
      %cst_29 = arith.constant dense<0.000000e+00> : vector<32xf32>
      %44 = vector.multi_reduction <add>, %43, %cst_29 [1] : vector<32x256xf32> to vector<32xf32>
      %45 = vector.shape_cast %44 : vector<32xf32> to vector<32x1xf32>
      %46 = arith.mulf %43, %43 : vector<32x256xf32>
      %cst_30 = arith.constant dense<0.000000e+00> : vector<32xf32>
      %47 = vector.multi_reduction <add>, %46, %cst_30 [1] : vector<32x256xf32> to vector<32xf32>
      %48 = vector.shape_cast %47 : vector<32xf32> to vector<32x1xf32>
      %c0_31 = arith.constant 0 : index
      %c0_32 = arith.constant 0 : index
      %49 = vector.load %arg3[%c0_31, %c0_32] : memref<32x32xf32, #tpu.memory_space<vmem>>, vector<32x32xf32>
      %50 = tpu.concatenate %45, %48 in 1 : vector<32x1xf32>, vector<32x1xf32> -> vector<32x2xf32>
      %cst_33 = arith.constant dense<0.000000e+00> : vector<32x2xf32>
      %51 = tpu.matmul %49, %50, %cst_33 {dimension_numbers = #tpu.dot_dimension_numbers<[1], [0], [0], [1], [0, 0, 1, 1], [], []>} : vector<32x32xf32>, vector<32x2xf32>, vector<32x2xf32> -> vector<32x2xf32>
      %52 = vector.extract_strided_slice %51 {offsets = [0, 0], sizes = [32, 1], strides = [1, 1]} : vector<32x2xf32> to vector<32x1xf32>
      %53 = vector.extract_strided_slice %51 {offsets = [0, 1], sizes = [32, 1], strides = [1, 1]} : vector<32x2xf32> to vector<32x1xf32>
      %54 = arith.mulf %52, %52 : vector<32x1xf32>
      %55 = arith.subf %53, %54 : vector<32x1xf32>
      %cst_34 = arith.constant 9.99999974E-6 : f32
      %56 = vector.broadcast %cst_34 : f32 to vector<32x1xf32>
      %57 = arith.addf %55, %56 : vector<32x1xf32>
      %58 = math.rsqrt %57 : vector<32x1xf32>
      %c0_35 = arith.constant 0 : index
      %c0_36 = arith.constant 0 : index
      %59 = vector.load %arg4[%c0_35, %c0_36] : memref<32x1xf32, #tpu.memory_space<vmem>>, vector<32x1xf32>
      %60 = arith.mulf %58, %59 : vector<32x1xf32>
      %c0_37 = arith.constant 0 : index
      %c0_38 = arith.constant 0 : index
      %61 = vector.load %arg5[%c0_37, %c0_38] : memref<32x1xf32, #tpu.memory_space<vmem>>, vector<32x1xf32>
      %62 = arith.mulf %52, %60 : vector<32x1xf32>
      %63 = arith.subf %61, %62 : vector<32x1xf32>
      %c0_39 = arith.constant 0 : index
      %c0_40 = arith.constant 0 : index
      %64 = vector.load %arg13[%c0_39, %c0_40] : memref<32x1xf32, #tpu.memory_space<vmem>>, vector<32x1xf32>
      tpu.vector_store %arg13[%c0_39, %c0_40], %60 {strides = array<i32>} : memref<32x1xf32, #tpu.memory_space<vmem>>, vector<32x1xf32>,
      %c0_41 = arith.constant 0 : index
      %c0_42 = arith.constant 0 : index
      %65 = vector.load %arg14[%c0_41, %c0_42] : memref<32x1xf32, #tpu.memory_space<vmem>>, vector<32x1xf32>
      tpu.vector_store %arg14[%c0_41, %c0_42], %63 {strides = array<i32>} : memref<32x1xf32, #tpu.memory_space<vmem>>, vector<32x1xf32>,
      %66 = vector.broadcast %60 : vector<32x1xf32> to vector<32x256xf32>
      %67 = arith.mulf %43, %66 : vector<32x256xf32>
      %68 = vector.broadcast %63 : vector<32x1xf32> to vector<32x256xf32>
      %69 = arith.addf %67, %68 : vector<32x256xf32>
      %c32 = arith.constant 32 : index
      %c0_43 = arith.constant 0 : index
      %70 = vector.load %arg6[%c32, %c0_43] : memref<96x32xf32, #tpu.memory_space<vmem>>, vector<64x32xf32>
      %cst_44 = arith.constant dense<0.000000e+00> : vector<64x256xf32>
      %71 = tpu.matmul %70, %69, %cst_44 {dimension_numbers = #tpu.dot_dimension_numbers<[1], [0], [0], [1], [0, 0, 1, 1], [], []>} : vector<64x32xf32>, vector<32x256xf32>, vector<64x256xf32> -> vector<64x256xf32>
      %c32_45 = arith.constant 32 : index
      %c0_46 = arith.constant 0 : index
      %72 = vector.load %arg7[%c32_45, %c0_46] : memref<96x1xf32, #tpu.memory_space<vmem>>, vector<64x1xf32>
      %73 = vector.broadcast %72 : vector<64x1xf32> to vector<64x256xf32>
      %74 = arith.addf %71, %73 : vector<64x256xf32>
      %75 = vector.extract_strided_slice %74 {offsets = [0, 0], sizes = [32, 256], strides = [1, 1]} : vector<64x256xf32> to vector<32x256xf32>
      %c0_47 = arith.constant 0 : index
      %c0_48 = arith.constant 0 : index
      %76 = vector.load %arg11[%c0_47, %c0_48] : memref<32x256xf32, #tpu.memory_space<vmem>>, vector<32x256xf32>
      tpu.vector_store %arg11[%c0_47, %c0_48], %75 {strides = array<i32>} : memref<32x256xf32, #tpu.memory_space<vmem>>, vector<32x256xf32>,
      %77 = vector.extract_strided_slice %74 {offsets = [32, 0], sizes = [32, 256], strides = [1, 1]} : vector<64x256xf32> to vector<32x256xf32>
      %c0_49 = arith.constant 0 : index
      %c0_50 = arith.constant 0 : index
      %78 = vector.load %arg12[%c0_49, %c0_50] : memref<32x256xf32, #tpu.memory_space<vmem>>, vector<32x256xf32>
      tpu.vector_store %arg12[%c0_49, %c0_50], %77 {strides = array<i32>} : memref<32x256xf32, #tpu.memory_space<vmem>>, vector<32x256xf32>,
    } else {
    }
    %c128_i32 = arith.constant 128 : i32
    %3 = arith.muli %arg1, %c128_i32 : i32
    %4 = tpu.assume_multiple %3, 128 : i32
    %c0 = arith.constant 0 : index
    %c0_1 = arith.constant 0 : index
    %5 = arith.index_cast %4 : i32 to index
    %6 = vector.load %arg2[%c0, %c0_1, %5] : memref<1x32x256xf32, #tpu.memory_space<vmem>>, vector<1x32x128xf32>
    %7 = vector.shape_cast %6 : vector<1x32x128xf32> to vector<32x128xf32>
    %c0_2 = arith.constant 0 : index
    %c0_3 = arith.constant 0 : index
    %8 = vector.load %arg13[%c0_2, %c0_3] : memref<32x1xf32, #tpu.memory_space<vmem>>, vector<32x1xf32>
    %9 = vector.broadcast %8 : vector<32x1xf32> to vector<32x128xf32>
    %10 = arith.mulf %7, %9 : vector<32x128xf32>
    %c0_4 = arith.constant 0 : index
    %c0_5 = arith.constant 0 : index
    %11 = vector.load %arg14[%c0_4, %c0_5] : memref<32x1xf32, #tpu.memory_space<vmem>>, vector<32x1xf32>
    %12 = vector.broadcast %11 : vector<32x1xf32> to vector<32x128xf32>
    %13 = arith.addf %10, %12 : vector<32x128xf32>
    %c0_6 = arith.constant 0 : index
    %c0_7 = arith.constant 0 : index
    %14 = vector.load %arg6[%c0_6, %c0_7] : memref<96x32xf32, #tpu.memory_space<vmem>>, vector<32x32xf32>
    %cst = arith.constant dense<0.000000e+00> : vector<32x128xf32>
    %15 = tpu.matmul %14, %13, %cst {dimension_numbers = #tpu.dot_dimension_numbers<[1], [0], [0], [1], [0, 0, 1, 1], [], []>} : vector<32x32xf32>, vector<32x128xf32>, vector<32x128xf32> -> vector<32x128xf32>
    %c0_8 = arith.constant 0 : index
    %c0_9 = arith.constant 0 : index
    %16 = vector.load %arg7[%c0_8, %c0_9] : memref<96x1xf32, #tpu.memory_space<vmem>>, vector<32x1xf32>
    %17 = vector.broadcast %16 : vector<32x1xf32> to vector<32x128xf32>
    %18 = arith.addf %15, %17 : vector<32x128xf32>
    %c0_10 = arith.constant 0 : index
    %c0_11 = arith.constant 0 : index
    %19 = vector.load %arg11[%c0_10, %c0_11] : memref<32x256xf32, #tpu.memory_space<vmem>>, vector<32x256xf32>
    %cst_12 = arith.constant dense<0.000000e+00> : vector<256x128xf32>
    %20 = tpu.matmul %19, %18, %cst_12 {dimension_numbers = #tpu.dot_dimension_numbers<[0], [0], [1], [1], [0, 1, 1, 1], [], []>} : vector<32x256xf32>, vector<32x128xf32>, vector<256x128xf32> -> vector<256x128xf32>
    %cst_13 = arith.constant dense<0xFF800000> : vector<128xf32>
    %21 = vector.multi_reduction <maximumf>, %20, %cst_13 [0] : vector<256x128xf32> to vector<128xf32>
    %22 = vector.shape_cast %21 : vector<128xf32> to vector<1x128xf32>
    %23 = vector.broadcast %22 : vector<1x128xf32> to vector<256x128xf32>
    %24 = arith.subf %20, %23 : vector<256x128xf32>
    %25 = math.exp %24 : vector<256x128xf32>
    %cst_14 = arith.constant dense<0.000000e+00> : vector<128xf32>
    %26 = vector.multi_reduction <add>, %25, %cst_14 [0] : vector<256x128xf32> to vector<128xf32>
    %27 = vector.shape_cast %26 : vector<128xf32> to vector<1x128xf32>
    %c0_15 = arith.constant 0 : index
    %c0_16 = arith.constant 0 : index
    %28 = vector.load %arg12[%c0_15, %c0_16] : memref<32x256xf32, #tpu.memory_space<vmem>>, vector<32x256xf32>
    %cst_17 = arith.constant dense<0.000000e+00> : vector<32x128xf32>
    %29 = tpu.matmul %28, %25, %cst_17 {dimension_numbers = #tpu.dot_dimension_numbers<[1], [0], [0], [1], [0, 0, 1, 1], [], []>} : vector<32x256xf32>, vector<256x128xf32>, vector<32x128xf32> -> vector<32x128xf32>
    %30 = tpu.reciprocal %27 {approx = true} : vector<1x128xf32> -> vector<1x128xf32>
    %31 = vector.broadcast %30 : vector<1x128xf32> to vector<32x128xf32>
    %32 = arith.mulf %29, %31 : vector<32x128xf32>
    %c0_18 = arith.constant 0 : index
    %c0_19 = arith.constant 0 : index
    %33 = vector.load %arg8[%c0_18, %c0_19] : memref<32x32xf32, #tpu.memory_space<vmem>>, vector<32x32xf32>
    %cst_20 = arith.constant dense<0.000000e+00> : vector<32x128xf32>
    %34 = tpu.matmul %33, %32, %cst_20 {dimension_numbers = #tpu.dot_dimension_numbers<[1], [0], [0], [1], [0, 0, 1, 1], [], []>} : vector<32x32xf32>, vector<32x128xf32>, vector<32x128xf32> -> vector<32x128xf32>
    %c0_21 = arith.constant 0 : index
    %c0_22 = arith.constant 0 : index
    %35 = vector.load %arg9[%c0_21, %c0_22] : memref<32x1xf32, #tpu.memory_space<vmem>>, vector<32x1xf32>
    %36 = vector.broadcast %35 : vector<32x1xf32> to vector<32x128xf32>
    %37 = arith.addf %34, %36 : vector<32x128xf32>
    %38 = arith.addf %37, %7 : vector<32x128xf32>
    %c0_23 = arith.constant 0 : index
    %c0_24 = arith.constant 0 : index
    %c0_25 = arith.constant 0 : index
    %39 = vector.load %arg10[%c0_23, %c0_24, %c0_25] : memref<1x32x128xf32, #tpu.memory_space<vmem>>, vector<1x32x128xf32>
    %40 = vector.shape_cast %39 : vector<1x32x128xf32> to vector<32x128xf32>
    %41 = vector.shape_cast %38 : vector<32x128xf32> to vector<1x32x128xf32>
    tpu.vector_store %arg10[%c0_23, %c0_24, %c0_25], %41 {strides = array<i32>} : memref<1x32x128xf32, #tpu.memory_space<vmem>>, vector<1x32x128xf32>,
    return
  }
  func.func @transform_0(%arg0: i32, %arg1: i32) -> (i32, i32, i32) {
    %c0_i32 = arith.constant 0 : i32
    %c0_i32_0 = arith.constant 0 : i32
    %c0_i32_1 = arith.constant 0 : i32
    return %arg0, %c0_i32, %c0_i32_0 : i32, i32, i32
  }
  func.func @transform_1(%arg0: i32, %arg1: i32) -> (i32, i32) {
    %c0_i32 = arith.constant 0 : i32
    %c0_i32_0 = arith.constant 0 : i32
    %c0_i32_1 = arith.constant 0 : i32
    return %c0_i32, %c0_i32_0 : i32, i32
  }
  func.func @transform_2(%arg0: i32, %arg1: i32) -> (i32, i32) {
    %c0_i32 = arith.constant 0 : i32
    %c0_i32_0 = arith.constant 0 : i32
    %c0_i32_1 = arith.constant 0 : i32
    return %c0_i32, %c0_i32_0 : i32, i32
  }
  func.func @transform_3(%arg0: i32, %arg1: i32) -> (i32, i32) {
    %c0_i32 = arith.constant 0 : i32
    %c0_i32_0 = arith.constant 0 : i32
    %c0_i32_1 = arith.constant 0 : i32
    return %c0_i32, %c0_i32_0 : i32, i32
  }
  func.func @transform_4(%arg0: i32, %arg1: i32) -> (i32, i32) {
    %c0_i32 = arith.constant 0 : i32
    %c0_i32_0 = arith.constant 0 : i32
    %c0_i32_1 = arith.constant 0 : i32
    return %c0_i32, %c0_i32_0 : i32, i32
  }
  func.func @transform_5(%arg0: i32, %arg1: i32) -> (i32, i32) {
    %c0_i32 = arith.constant 0 : i32
    %c0_i32_0 = arith.constant 0 : i32
    %c0_i32_1 = arith.constant 0 : i32
    return %c0_i32, %c0_i32_0 : i32, i32
  }
  func.func @transform_6(%arg0: i32, %arg1: i32) -> (i32, i32) {
    %c0_i32 = arith.constant 0 : i32
    %c0_i32_0 = arith.constant 0 : i32
    %c0_i32_1 = arith.constant 0 : i32
    return %c0_i32, %c0_i32_0 : i32, i32
  }
  func.func @transform_7(%arg0: i32, %arg1: i32) -> (i32, i32) {
    %c0_i32 = arith.constant 0 : i32
    %c0_i32_0 = arith.constant 0 : i32
    %c0_i32_1 = arith.constant 0 : i32
    return %c0_i32, %c0_i32_0 : i32, i32
  }
  func.func @transform_8(%arg0: i32, %arg1: i32) -> (i32, i32, i32) {
    %c0_i32 = arith.constant 0 : i32
    %c0_i32_0 = arith.constant 0 : i32
    return %arg0, %c0_i32, %arg1 : i32, i32, i32
  }
}

</mosaic_0001>

<llo_original>
// kernel: tpu_custom_call.1
$region0: #{tpu_custom_call.1}
  #allocation0 [shape = 'u32[]', space=smem, size = 0x4, offset = 0x4, fixed_abs, tag = 'smem constant byte address 0x4 - core index']
  #allocation1 [shape = 'u32[144,128]{1,0:T(1,128)}', space=vmem, size = 0x12000, scoped, tag = 'internal scratch']
  #allocation2 [shape = 'f32[32,256]{1,0:T(8,128)}', space=vmem, size = 0x8000, scoped, tag = 'scratch operand']
  #allocation3 [shape = 'f32[32,256]{1,0:T(8,128)}', space=vmem, size = 0x8000, scoped, tag = 'scratch operand']
  #allocation4 [shape = 'f32[32,1]{1,0:T(8,128)}', space=vmem, size = 0x4000, scoped, tag = 'scratch operand']
  #allocation5 [shape = 'f32[32,1]{1,0:T(8,128)}', space=vmem, size = 0x4000, scoped, tag = 'scratch operand']
  %s0 = inlined_call_operand.vmem [shape: f32[2,32,256], index: 0, kind: input, shape index: {}]
  %s1 = inlined_call_operand.vmem [shape: f32[32,32], index: 1, kind: input, shape index: {}]
  %s2 = inlined_call_operand.vmem [shape: f32[32,1], index: 2, kind: input, shape index: {}]
  %s3 = inlined_call_operand.vmem [shape: f32[32,1], index: 3, kind: input, shape index: {}]
  %s4 = inlined_call_operand.vmem [shape: f32[96,32], index: 4, kind: input, shape index: {}]
  %s5 = inlined_call_operand.vmem [shape: f32[96,1], index: 5, kind: input, shape index: {}]
  %s6 = inlined_call_operand.vmem [shape: f32[32,32], index: 6, kind: input, shape index: {}]
  %s7 = inlined_call_operand.vmem [shape: f32[32,1], index: 7, kind: input, shape index: {}]
  %s8 = inlined_call_operand.hbm [shape: f32[2,32,256], index: 8, kind: output, shape index: {}]
  %s9 = sld [smem:[#allocation0]]
  $region69: #{tpu_custom_call.1} parent=0
    _
  %s11 = ssub.s32 1, %s9
  %s12 = scalar_select 0, %s11, %s9
  $region1: #{tpu_custom_call.1} parent=0
    #allocation6 [shape = 'u8[32768]{0}', space=vmem, size = 0x8000, scoped, tag = 'output window, operand 0']
    #allocation7 [shape = 's32[2]{0}', space=sflag, size = 0x8, scoped, tag = 'scoped memory for tpu_custom_call.1']
    %13 = vsyncpa [#allocation7], 0
    %s14 = scalar_lea.sflag [#allocation7], 1
    %15 = vsyncpa %s14, 0
    loop: start=0, step=1, limit=6
    $region2: #{tpu_custom_call.1} parent=1 // loop_pre_header
      _
    $region3: #{tpu_custom_call.1} parent=1 // loop_header
      %s17 = sphi 0, %s21
      %p18 = scmp.ge.s32.totalorder %s17, 6
      %s24 = sphi 0, %s36
      %s25 = sphi 0, %s32
      %s26 = sphi 0, %s24
      %s27 = sphi 0, %s25
      %s28 = sphi 0, %s26
      %s29 = sphi 0, %s27
      %s39 = sphi 0, %s41
      %s42 = sphi 0, %s39
      %s43 = sphi 0, %s42
      %s59 = sphi 0, %s43
      %s63 = sphi 0, %s63
      %s65 = sphi 0, %s63
      %s66 = sphi 0, %s65
      %s80 = sphi 0, %s66
      %s84 = sphi 0, %s84
      %s86 = sphi 0, %s84
      %s87 = sphi 0, %s86
      %s101 = sphi 0, %s87
      %s105 = sphi 0, %s105
      %s107 = sphi 0, %s105
      %s108 = sphi 0, %s107
      %s122 = sphi 0, %s108
      %s126 = sphi 0, %s126
      %s128 = sphi 0, %s126
      %s129 = sphi 0, %s128
      %s143 = sphi 0, %s129
      %s147 = sphi 0, %s147
      %s149 = sphi 0, %s147
      %s150 = sphi 0, %s149
      %s164 = sphi 0, %s150
      %s168 = sphi 0, %s168
      %s170 = sphi 0, %s168
      %s171 = sphi 0, %s170
      %s185 = sphi 0, %s171
      %s189 = sphi 0, %s189
      %s191 = sphi 0, %s189
      %s192 = sphi 0, %s191
      %s206 = sphi 0, %s192
      %s214 = sphi 0, %s216
      %s217 = sphi 0, %s214
      %s218 = sphi 0, %s217
      %s234 = sphi 0, %s218
    $region4: #{tpu_custom_call.1} parent=1 // loop_header_branch
      %20 = sbr.rel (%p18) target = $region8
    $region5: #{tpu_custom_call.1} parent=1 // loop_body
      %s22 = ssub.s32 %s17, 1
      %s23 = ssub.s32 %s17, 2
      %s30 = sadd.s32 1, %s25
      %p31 = scmp.ge.s32.totalorder %s30, 2
      %s32 = scalar_select %p31, 0, %s30
      %s33 = sadd.s32 1, %s24
      %s34 = scalar_select %p31, %s33, %s24
      %p35 = scmp.ge.s32.totalorder %s34, 2
      %s36 = scalar_select %p35, 0, %s34
      %s37 = ssub.s32 %s24, %s36
      %p38 = scmp.eq.s32.totalorder %s37, 0
      %s40 = sadd.s32 %s39, 1
      %s41 = scalar_select %p38, %s39, %s40
      %p44 = pneg %p38
      %p45 = scmp.eq.s32.totalorder %s17, 3
      %p46 = por %p44, %p45
      %p47 = scmp.ne.s32.totalorder %s39, %s42
      %p48 = scmp.eq.s32.totalorder %s17, 0
      %p49 = por %p47, %p48
      %p50 = scmp.ne.s32.totalorder %s39, %s42
      %p51 = scmp.eq.s32.totalorder %s22, 3
      %p52 = por %p50, %p51
      %p53 = scmp.ne.s32.totalorder %s42, %s43
      %p54 = scmp.eq.s32.totalorder %s22, 0
      %p55 = por %p53, %p54
      %p56 = scmp.ne.s32.totalorder %s42, %s43
      %p57 = scmp.eq.s32.totalorder %s23, 3
      %p58 = por %p56, %p57
      %p60 = scmp.ne.s32.totalorder %s43, %s59
      %p61 = scmp.eq.s32.totalorder %s23, 0
      %p62 = por %p60, %p61
      %s64 = sadd.s32 %s63, 1
      %p67 = scmp.eq.s32.totalorder %s17, 3
      %p68 = scmp.ne.s32.totalorder %s63, %s65
      %p69 = scmp.eq.s32.totalorder %s17, 0
      %p70 = por %p68, %p69
      %p71 = scmp.ne.s32.totalorder %s63, %s65
      %p72 = scmp.eq.s32.totalorder %s22, 3
      %p73 = por %p71, %p72
      %p74 = scmp.ne.s32.totalorder %s65, %s66
      %p75 = scmp.eq.s32.totalorder %s22, 0
      %p76 = por %p74, %p75
      %p77 = scmp.ne.s32.totalorder %s65, %s66
      %p78 = scmp.eq.s32.totalorder %s23, 3
      %p79 = por %p77, %p78
      %p81 = scmp.ne.s32.totalorder %s66, %s80
      %p82 = scmp.eq.s32.totalorder %s23, 0
      %p83 = por %p81, %p82
      %s85 = sadd.s32 %s84, 1
      %p88 = scmp.eq.s32.totalorder %s17, 3
      %p89 = scmp.ne.s32.totalorder %s84, %s86
      %p90 = scmp.eq.s32.totalorder %s17, 0
      %p91 = por %p89, %p90
      %p92 = scmp.ne.s32.totalorder %s84, %s86
      %p93 = scmp.eq.s32.totalorder %s22, 3
      %p94 = por %p92, %p93
      %p95 = scmp.ne.s32.totalorder %s86, %s87
      %p96 = scmp.eq.s32.totalorder %s22, 0
      %p97 = por %p95, %p96
      %p98 = scmp.ne.s32.totalorder %s86, %s87
      %p99 = scmp.eq.s32.totalorder %s23, 3
      %p100 = por %p98, %p99
      %p102 = scmp.ne.s32.totalorder %s87, %s101
      %p103 = scmp.eq.s32.totalorder %s23, 0
      %p104 = por %p102, %p103
      %s106 = sadd.s32 %s105, 1
      %p109 = scmp.eq.s32.totalorder %s17, 3
      %p110 = scmp.ne.s32.totalorder %s105, %s107
      %p111 = scmp.eq.s32.totalorder %s17, 0
      %p112 = por %p110, %p111
      %p113 = scmp.ne.s32.totalorder %s105, %s107
      %p114 = scmp.eq.s32.totalorder %s22, 3
      %p115 = por %p113, %p114
      %p116 = scmp.ne.s32.totalorder %s107, %s108
      %p117 = scmp.eq.s32.totalorder %s22, 0
      %p118 = por %p116, %p117
      %p119 = scmp.ne.s32.totalorder %s107, %s108
      %p120 = scmp.eq.s32.totalorder %s23, 3
      %p121 = por %p119, %p120
      %p123 = scmp.ne.s32.totalorder %s108, %s122
      %p124 = scmp.eq.s32.totalorder %s23, 0
      %p125 = por %p123, %p124
      %s127 = sadd.s32 %s126, 1
      %p130 = scmp.eq.s32.totalorder %s17, 3
      %p131 = scmp.ne.s32.totalorder %s126, %s128
      %p132 = scmp.eq.s32.totalorder %s17, 0
      %p133 = por %p131, %p132
      %p134 = scmp.ne.s32.totalorder %s126, %s128
      %p135 = scmp.eq.s32.totalorder %s22, 3
      %p136 = por %p134, %p135
      %p137 = scmp.ne.s32.totalorder %s128, %s129
      %p138 = scmp.eq.s32.totalorder %s22, 0
      %p139 = por %p137, %p138
      %p140 = scmp.ne.s32.totalorder %s128, %s129
      %p141 = scmp.eq.s32.totalorder %s23, 3
      %p142 = por %p140, %p141
      %p144 = scmp.ne.s32.totalorder %s129, %s143
      %p145 = scmp.eq.s32.totalorder %s23, 0
      %p146 = por %p144, %p145
      %s148 = sadd.s32 %s147, 1
      %p151 = scmp.eq.s32.totalorder %s17, 3
      %p152 = scmp.ne.s32.totalorder %s147, %s149
      %p153 = scmp.eq.s32.totalorder %s17, 0
      %p154 = por %p152, %p153
      %p155 = scmp.ne.s32.totalorder %s147, %s149
      %p156 = scmp.eq.s32.totalorder %s22, 3
      %p157 = por %p155, %p156
      %p158 = scmp.ne.s32.totalorder %s149, %s150
      %p159 = scmp.eq.s32.totalorder %s22, 0
      %p160 = por %p158, %p159
      %p161 = scmp.ne.s32.totalorder %s149, %s150
      %p162 = scmp.eq.s32.totalorder %s23, 3
      %p163 = por %p161, %p162
      %p165 = scmp.ne.s32.totalorder %s150, %s164
      %p166 = scmp.eq.s32.totalorder %s23, 0
      %p167 = por %p165, %p166
      %s169 = sadd.s32 %s168, 1
      %p172 = scmp.eq.s32.totalorder %s17, 3
      %p173 = scmp.ne.s32.totalorder %s168, %s170
      %p174 = scmp.eq.s32.totalorder %s17, 0
      %p175 = por %p173, %p174
      %p176 = scmp.ne.s32.totalorder %s168, %s170
      %p177 = scmp.eq.s32.totalorder %s22, 3
      %p178 = por %p176, %p177
      %p179 = scmp.ne.s32.totalorder %s170, %s171
      %p180 = scmp.eq.s32.totalorder %s22, 0
      %p181 = por %p179, %p180
      %p182 = scmp.ne.s32.totalorder %s170, %s171
      %p183 = scmp.eq.s32.totalorder %s23, 3
      %p184 = por %p182, %p183
      %p186 = scmp.ne.s32.totalorder %s171, %s185
      %p187 = scmp.eq.s32.totalorder %s23, 0
      %p188 = por %p186, %p187
      %s190 = sadd.s32 %s189, 1
      %p193 = scmp.eq.s32.totalorder %s17, 3
      %p194 = scmp.ne.s32.totalorder %s189, %s191
      %p195 = scmp.eq.s32.totalorder %s17, 0
      %p196 = por %p194, %p195
      %p197 = scmp.ne.s32.totalorder %s189, %s191
      %p198 = scmp.eq.s32.totalorder %s22, 3
      %p199 = por %p197, %p198
      %p200 = scmp.ne.s32.totalorder %s191, %s192
      %p201 = scmp.eq.s32.totalorder %s22, 0
      %p202 = por %p200, %p201
      %p203 = scmp.ne.s32.totalorder %s191, %s192
      %p204 = scmp.eq.s32.totalorder %s23, 3
      %p205 = por %p203, %p204
      %p207 = scmp.ne.s32.totalorder %s192, %s206
      %p208 = scmp.eq.s32.totalorder %s23, 0
      %p209 = por %p207, %p208
      %s210 = ssub.s32 %s24, %s36
      %s211 = ssub.s32 %s25, %s32
      %s212 = sor.u32 %s210, %s211
      %p213 = scmp.eq.s32.totalorder %s212, 0
      %s215 = sadd.s32 %s214, 1
      %s216 = scalar_select %p213, %s214, %s215
      %p219 = pneg %p213
      %p220 = scmp.eq.s32.totalorder %s17, 3
      %p221 = por %p219, %p220
      %p222 = scmp.ne.s32.totalorder %s214, %s217
      %p223 = scmp.eq.s32.totalorder %s17, 0
      %p224 = por %p222, %p223
      %p225 = scmp.ne.s32.totalorder %s214, %s217
      %p226 = scmp.eq.s32.totalorder %s22, 3
      %p227 = por %p225, %p226
      %p228 = scmp.ne.s32.totalorder %s217, %s218
      %p229 = scmp.eq.s32.totalorder %s22, 0
      %p230 = por %p228, %p229
      %p231 = scmp.ne.s32.totalorder %s217, %s218
      %p232 = scmp.eq.s32.totalorder %s23, 3
      %p233 = por %p231, %p232
      %p235 = scmp.ne.s32.totalorder %s218, %s234
      %p236 = scmp.eq.s32.totalorder %s23, 0
      %p237 = por %p235, %p236
      %p238 = scmp.le.s32.totalorder 1, %s17
      %p239 = scmp.lt.s32.totalorder %s17, 5
      %p240 = pnand %p238, %p239
      %p241 = pneg %p240
      // Predicated region
      $region9: #{tpu_custom_call.1} parent=5 // pred_check
        _
      $region10: #{tpu_custom_call.1} parent=5 // pred_check_branch
        %243 = sbr.rel (%p240) target = $region12
      $region11: #{tpu_custom_call.1} parent=5 // pred_region
        %s244 = ssub.s32 %s17, 1
        // Predicated region
        $region13: #{tpu_custom_call.1} parent=11 // pred_check
          %p245 = pneg %p76
        $region14: #{tpu_custom_call.1} parent=11 // pred_check_branch
          %247 = sbr.rel (%p245) target = $region16
        $region15: #{tpu_custom_call.1} parent=11 // pred_region
          _
        $region16: #{tpu_custom_call.1} parent=11 // pred_fallthru
          _
        // Predicated region
        $region17: #{tpu_custom_call.1} parent=11 // pred_check
          %p248 = pneg %p97
        $region18: #{tpu_custom_call.1} parent=11 // pred_check_branch
          %250 = sbr.rel (%p248) target = $region20
        $region19: #{tpu_custom_call.1} parent=11 // pred_region
          _
        $region20: #{tpu_custom_call.1} parent=11 // pred_fallthru
          _
        // Predicated region
        $region21: #{tpu_custom_call.1} parent=11 // pred_check
          %p251 = pneg %p118
        $region22: #{tpu_custom_call.1} parent=11 // pred_check_branch
          %253 = sbr.rel (%p251) target = $region24
        $region23: #{tpu_custom_call.1} parent=11 // pred_region
          _
        $region24: #{tpu_custom_call.1} parent=11 // pred_fallthru
          _
        // Predicated region
        $region25: #{tpu_custom_call.1} parent=11 // pred_check
          %p254 = pneg %p139
        $region26: #{tpu_custom_call.1} parent=11 // pred_check_branch
          %256 = sbr.rel (%p254) target = $region28
        $region27: #{tpu_custom_call.1} parent=11 // pred_region
          _
        $region28: #{tpu_custom_call.1} parent=11 // pred_fallthru
          _
        // Predicated region
        $region29: #{tpu_custom_call.1} parent=11 // pred_check
          %p257 = pneg %p160
        $region30: #{tpu_custom_call.1} parent=11 // pred_check_branch
          %259 = sbr.rel (%p257) target = $region32
        $region31: #{tpu_custom_call.1} parent=11 // pred_region
          _
        $region32: #{tpu_custom_call.1} parent=11 // pred_fallthru
          _
        // Predicated region
        $region33: #{tpu_custom_call.1} parent=11 // pred_check
          %p260 = pneg %p181
        $region34: #{tpu_custom_call.1} parent=11 // pred_check_branch
          %262 = sbr.rel (%p260) target = $region36
        $region35: #{tpu_custom_call.1} parent=11 // pred_region
          _
        $region36: #{tpu_custom_call.1} parent=11 // pred_fallthru
          _
        // Predicated region
        $region37: #{tpu_custom_call.1} parent=11 // pred_check
          %p263 = pneg %p202
        $region38: #{tpu_custom_call.1} parent=11 // pred_check_branch
          %265 = sbr.rel (%p263) target = $region40
        $region39: #{tpu_custom_call.1} parent=11 // pred_region
          _
        $region40: #{tpu_custom_call.1} parent=11 // pred_fallthru
          _
      $region12: #{tpu_custom_call.1} parent=5 // pred_fallthru
        _
      %p266 = scmp.lt.s32.totalorder %s17, 4
      // Predicated region
      $region41: #{tpu_custom_call.1} parent=5 // pred_check
        %p267 = pneg %p266
      $region42: #{tpu_custom_call.1} parent=5 // pred_check_branch
        %269 = sbr.rel (%p267) target = $region44
      $region43: #{tpu_custom_call.1} parent=5 // pred_region
        // Predicated region
        $region45: #{tpu_custom_call.1} parent=43 // pred_check
          %p270 = pneg %p49
        $region46: #{tpu_custom_call.1} parent=43 // pred_check_branch
          %272 = sbr.rel (%p270) target = $region48
        $region47: #{tpu_custom_call.1} parent=43 // pred_region
          %p273 = scmp.lt.s32.totalorder %s24, 1
          %s274 = scalar_select %p273, %s24, 1
          %s275 = smul.addr %s274, 8
          %s276 = smul.addr %s275, 8
          %s277 = scalar_lea.vmem %s0, %s276
        $region48: #{tpu_custom_call.1} parent=43 // pred_fallthru
          _
      $region44: #{tpu_custom_call.1} parent=5 // pred_fallthru
        _
      %p278 = scmp.le.s32.totalorder 1, %s17
      %p279 = scmp.lt.s32.totalorder %s17, 5
      %p280 = pnand %p278, %p279
      %p281 = pneg %p280
      // Predicated region
      $region49: #{tpu_custom_call.1} parent=5 // pred_check
        _
      $region50: #{tpu_custom_call.1} parent=5 // pred_check_branch
        %283 = sbr.rel (%p280) target = $region52
      $region51: #{tpu_custom_call.1} parent=5 // pred_region
        %s284 = ssub.s32 %s17, 1
        %p285 = scmp.lt.s32.totalorder %s26, 1
        %s286 = scalar_select %p285, %s26, 1
        %s287 = smul.addr %s286, 8
        %s288 = smul.addr %s287, 8
        %s289 = scalar_lea.vmem %s0, %s288
        %p290 = pneg %p55
        %p291 = pneg %p52
        %p292 = pneg %p76
        %p293 = pneg %p73
        %p294 = pneg %p97
        %p295 = pneg %p94
        %p296 = pneg %p118
        %p297 = pneg %p115
        %p298 = pneg %p139
        %p299 = pneg %p136
        %p300 = pneg %p160
        %p301 = pneg %p157
        %p302 = pneg %p181
        %p303 = pneg %p178
        %p304 = pneg %p202
        %p305 = pneg %p199
        %p306 = pneg %p230
        %p307 = pneg %p227
        %s308 = sand.u32 %s217, 1
        %s309 = scalar_lea.sflag [#allocation7], %s308
        %s310 = sand.u32 %s217, 1
        %s311 = smul.addr %s310, 32
        %s312 = scalar_lea.vmem [#allocation6], %s311
        %p313 = scmp.lt.s32.totalorder %s26, 1
        %s314 = scalar_select %p313, %s26, 1
        %s315 = smul.addr %s314, 8
        %s316 = smul.addr %s315, 8
        %s317 = scalar_lea.vmem %s0, %s316
        %p318 = scmp.eq.s32.totalorder %s27, 0
        // Predicated region
        $region53: #{tpu_custom_call.1} parent=51 // pred_check
          %p319 = pneg %p318
        $region54: #{tpu_custom_call.1} parent=51 // pred_check_branch
          %321 = sbr.rel (%p319) target = $region56
        $region55: #{tpu_custom_call.1} parent=51 // pred_region
          %v322 = vld [vmem:[%s317] sm:$0xff]
          %v323 = vld [vmem:[%s317 + $0x8] sm:$0xff]
          %v324 = vld [vmem:[%s317 + $0x10] sm:$0xff]
          %v325 = vld [vmem:[%s317 + $0x18] sm:$0xff]
          %v326 = vld [vmem:[%s317 + $0x20] sm:$0xff]
          %v327 = vld [vmem:[%s317 + $0x28] sm:$0xff]
          %v328 = vld [vmem:[%s317 + $0x30] sm:$0xff]
          %v329 = vld [vmem:[%s317 + $0x38] sm:$0xff]
          %v330 = vadd.f32 %v322, %v323
          %331 = vadd.xlane.f32.xlu0 %v330
          %v332 = vpop.xlane.xlu0 %331
          %v333 = vadd.f32 %v324, %v325
          %334 = vadd.xlane.f32.xlu0 %v333
          %v335 = vpop.xlane.xlu0 %334
          %v336 = vadd.f32 %v326, %v327
          %337 = vadd.xlane.f32.xlu0 %v336
          %v338 = vpop.xlane.xlu0 %337
          %v339 = vadd.f32 %v328, %v329
          %340 = vadd.xlane.f32.xlu0 %v339
          %v341 = vpop.xlane.xlu0 %340
          %v342 = vmul.f32 %v322, %v322
          %v343 = vmul.f32 %v323, %v323
          %v344 = vmul.f32 %v324, %v324
          %v345 = vmul.f32 %v325, %v325
          %v346 = vmul.f32 %v326, %v326
          %v347 = vmul.f32 %v327, %v327
          %v348 = vmul.f32 %v328, %v328
          %v349 = vmul.f32 %v329, %v329
          %v350 = vadd.f32 %v342, %v343
          %351 = vadd.xlane.f32.xlu0 %v350
          %v352 = vpop.xlane.xlu0 %351
          %v353 = vadd.f32 %v344, %v345
          %354 = vadd.xlane.f32.xlu0 %v353
          %v355 = vpop.xlane.xlu0 %354
          %v356 = vadd.f32 %v346, %v347
          %357 = vadd.xlane.f32.xlu0 %v356
          %v358 = vpop.xlane.xlu0 %357
          %v359 = vadd.f32 %v348, %v349
          %360 = vadd.xlane.f32.xlu0 %v359
          %v361 = vpop.xlane.xlu0 %360
          %v362 = vld [vmem:[%s1] sm:$0xff]
          %v363 = vld [vmem:[%s1 + $0x8] sm:$0xff]
          %v364 = vld [vmem:[%s1 + $0x10] sm:$0xff]
          %v365 = vld [vmem:[%s1 + $0x18] sm:$0xff]
          %vm366 = vcmask 7168
          %v367 = vsel %vm366, %v332, %v352
          %v368 = vsel %vm366, %v335, %v355
          %v369 = vsel %vm366, %v338, %v358
          %v370 = vsel %vm366, %v341, %v361
          %vm371 = vcmask 261120
          %v373 = vsel %vm371, %v362, 0
          %v376 = vsel %vm371, %v363, 0
          %v379 = vsel %vm371, %v364, 0
          %v382 = vsel %vm371, %v365, 0
          %384 = vmatprep.subr.mxu0 0.0
          %385 = vmatpush1.msra.mxu0 %v367
          %386 = vmatprep.subr.mxu0 0.0
          %387 = vmatpush1.msra.mxu0 %v368
          %388 = vmatprep.subr.mxu0 0.0
          %389 = vmatpush1.msra.mxu0 %v369
          %390 = vmatprep.subr.mxu0 0.0
          %391 = vmatpush1.msra.mxu0 %v370
          %392 = vmatprep.subr.mxu0 0.0
          %393 = vmatpush1.msra.mxu0 0.0
          %394 = vmatprep.subr.mxu0 0.0
          %395 = vmatpush1.msra.mxu0 0.0
          %396 = vmatprep.subr.mxu0 0.0
          %397 = vmatpush1.msra.mxu0 0.0
          %398 = vmatprep.subr.mxu0 0.0
          %399 = vmatpush1.msra.mxu0 0.0
          %400 = vmatprep.subr.mxu0 0.0
          %401 = vmatpush1.msra.mxu0 0.0
          %402 = vmatprep.subr.mxu0 0.0
          %403 = vmatpush1.msra.mxu0 0.0
          %404 = vmatprep.subr.mxu0 0.0
          %405 = vmatpush1.msra.mxu0 0.0
          %406 = vmatprep.subr.mxu0 0.0
          %407 = vmatpush1.msra.mxu0 0.0
          %408 = vmatprep.subr.mxu0 0.0
          %409 = vmatpush1.msra.mxu0 0.0
          %410 = vmatprep.subr.mxu0 0.0
          %411 = vmatpush1.msra.mxu0 0.0
          %412 = vmatprep.subr.mxu0 0.0
          %413 = vmatpush1.msra.mxu0 0.0
          %414 = vmatprep.subr.mxu0 0.0
          %415 = vmatpush1.msra.mxu0 0.0
          %416 = vmatprep.subr.mxu0 0.0
          %417 = vmatpush1.msra.mxu0 0.0
          %418 = vmatprep.subr.mxu0 0.0
          %419 = vmatpush1.msra.mxu0 0.0
          %420 = vmatprep.subr.mxu0 0.0
          %421 = vmatpush1.msra.mxu0 0.0
          %422 = vmatprep.subr.mxu0 0.0
          %423 = vmatpush1.msra.mxu0 0.0
          %424 = vmatprep.subr.mxu0 0.0
          %425 = vmatpush1.msra.mxu0 0.0
          %426 = vmatprep.subr.mxu0 0.0
          %427 = vmatpush1.msra.mxu0 0.0
          %428 = vmatprep.subr.mxu0 0.0
          %429 = vmatpush1.msra.mxu0 0.0
          %430 = vmatprep.subr.mxu0 0.0
          %431 = vmatpush1.msra.mxu0 0.0
          %432 = vmatprep.subr.mxu0 0.0
          %433 = vmatpush1.msra.mxu0 0.0
          %434 = vmatprep.subr.mxu0 0.0
          %435 = vmatpush1.msra.mxu0 0.0
          %436 = vmatprep.subr.mxu0 0.0
          %437 = vmatpush1.msra.mxu0 0.0
          %438 = vmatprep.subr.mxu0 0.0
          %439 = vmatpush1.msra.mxu0 0.0
          %440 = vmatprep.subr.mxu0 0.0
          %441 = vmatpush1.msra.mxu0 0.0
          %442 = vmatprep.subr.mxu0 0.0
          %443 = vmatpush1.msra.mxu0 0.0
          %444 = vmatprep.subr.mxu0 0.0
          %445 = vmatpush1.msra.mxu0 0.0
          %446 = vmatprep.subr.mxu0 0.0
          %447 = vmatpush1.msra.mxu0 0.0
          %448 = vmatprep.mubr.f32.mxu0 0.0
          %449 = vmatmul.mubr.f32.gmra.mrb[0].mxu0 %v373
          %v450 = vpop.f32.mrb[0].mxu0
          %v451 = vadd.f32 0.0, %v450
          %v452 = vpop.f32.mrb[0].mxu0
          %453 = vmatprep.mubr.f32.mxu0 0.0
          %454 = vmatmul.mubr.f32.gmra.mrb[0].mxu0 %v376
          %v455 = vpop.f32.mrb[0].mxu0
          %v456 = vadd.f32 0.0, %v455
          %v457 = vpop.f32.mrb[0].mxu0
          %458 = vmatprep.mubr.f32.mxu0 0.0
          %459 = vmatmul.mubr.f32.gmra.mrb[0].mxu0 %v379
          %v460 = vpop.f32.mrb[0].mxu0
          %v461 = vadd.f32 0.0, %v460
          %v462 = vpop.f32.mrb[0].mxu0
          %463 = vmatprep.mubr.f32.mxu0 0.0
          %464 = vmatmul.mubr.f32.gmra.mrb[0].mxu0 %v382
          %v465 = vpop.f32.mrb[0].mxu0
          %v466 = vadd.f32 0.0, %v465
          %v467 = vpop.f32.mrb[0].mxu0
          %468 = vdwg.mxu0
          %v469 = vmul.f32 %v451, %v451
          %v470 = vmul.f32 %v456, %v456
          %v471 = vmul.f32 %v461, %v461
          %v472 = vmul.f32 %v466, %v466
          %477 = vrot.lane.b32.xlu0 %v469, 1
          %v478 = vpop.permute.xlu0 %477
          %479 = vrot.lane.b32.xlu0 %v470, 1
          %v480 = vpop.permute.xlu0 %479
          %481 = vrot.lane.b32.xlu0 %v471, 1
          %v482 = vpop.permute.xlu0 %481
          %483 = vrot.lane.b32.xlu0 %v472, 1
          %v484 = vpop.permute.xlu0 %483
          %v489 = vsub.f32 %v451, %v478
          %v490 = vsub.f32 %v456, %v480
          %v491 = vsub.f32 %v461, %v482
          %v492 = vsub.f32 %v466, %v484
          %v493 = vadd.f32 %v489, 1e-05
          %v494 = vadd.f32 %v490, 1e-05
          %v495 = vadd.f32 %v491, 1e-05
          %v496 = vadd.f32 %v492, 1e-05
          %v497 = vrsqrt.pop %v493
          %v498 = vrsqrt.pop %v494
          %v499 = vrsqrt.pop %v495
          %v500 = vrsqrt.pop %v496
          %v501 = vld [vmem:[%s2] sm:$0xff]
          %v502 = vld [vmem:[%s2 + $0x8] sm:$0xff]
          %v503 = vld [vmem:[%s2 + $0x10] sm:$0xff]
          %v504 = vld [vmem:[%s2 + $0x18] sm:$0xff]
          %509 = vrot.lane.b32.xlu0 %v501, 1
          %v510 = vpop.permute.xlu0 %509
          %511 = vrot.lane.b32.xlu0 %v502, 1
          %v512 = vpop.permute.xlu0 %511
          %513 = vrot.lane.b32.xlu0 %v503, 1
          %v514 = vpop.permute.xlu0 %513
          %515 = vrot.lane.b32.xlu0 %v504, 1
          %v516 = vpop.permute.xlu0 %515
          %v521 = vmul.f32 %v497, %v510
          %v522 = vmul.f32 %v498, %v512
          %v523 = vmul.f32 %v499, %v514
          %v524 = vmul.f32 %v500, %v516
          %v525 = vld [vmem:[%s3] sm:$0xff]
          %v526 = vld [vmem:[%s3 + $0x8] sm:$0xff]
          %v527 = vld [vmem:[%s3 + $0x10] sm:$0xff]
          %v528 = vld [vmem:[%s3 + $0x18] sm:$0xff]
          %533 = vrot.lane.b32.xlu0 %v521, 127
          %v534 = vpop.permute.xlu0 %533
          %535 = vrot.lane.b32.xlu0 %v522, 127
          %v536 = vpop.permute.xlu0 %535
          %537 = vrot.lane.b32.xlu0 %v523, 127
          %v538 = vpop.permute.xlu0 %537
          %539 = vrot.lane.b32.xlu0 %v524, 127
          %v540 = vpop.permute.xlu0 %539
          %v545 = vmul.f32 %v451, %v534
          %v546 = vmul.f32 %v456, %v536
          %v547 = vmul.f32 %v461, %v538
          %v548 = vmul.f32 %v466, %v540
          %v549 = vsub.f32 %v525, %v545
          %v550 = vsub.f32 %v526, %v546
          %v551 = vsub.f32 %v527, %v547
          %v552 = vsub.f32 %v528, %v548
          %553 = vst.msk [vmem:[#allocation4] sm:$0xff] %vm366, %v534
          %554 = vst.msk [vmem:[#allocation4 + $0x8] sm:$0xff] %vm366, %v536
          %555 = vst.msk [vmem:[#allocation4 + $0x10] sm:$0xff] %vm366, %v538
          %556 = vst.msk [vmem:[#allocation4 + $0x18] sm:$0xff] %vm366, %v540
          %557 = vst.msk [vmem:[#allocation5] sm:$0xff] %vm366, %v549
          %558 = vst.msk [vmem:[#allocation5 + $0x8] sm:$0xff] %vm366, %v550
          %559 = vst.msk [vmem:[#allocation5 + $0x10] sm:$0xff] %vm366, %v551
          %560 = vst.msk [vmem:[#allocation5 + $0x18] sm:$0xff] %vm366, %v552
          %561 = vset.pattern.permute.xlu0 1
          %562 = vperm.xlu0 %561, %v521
          %v563 = vpop.permute.xlu0 %562
          %565 = vset.pattern.permute.xlu0 1
          %566 = vperm.xlu0 %565, %v522
          %v567 = vpop.permute.xlu0 %566
          %569 = vset.pattern.permute.xlu0 1
          %570 = vperm.xlu0 %569, %v523
          %v571 = vpop.permute.xlu0 %570
          %573 = vset.pattern.permute.xlu0 1
          %574 = vperm.xlu0 %573, %v524
          %v575 = vpop.permute.xlu0 %574
          %v577 = vmul.f32 %v322, %v563
          %v578 = vmul.f32 %v323, %v563
          %v579 = vmul.f32 %v324, %v567
          %v580 = vmul.f32 %v325, %v567
          %v581 = vmul.f32 %v326, %v571
          %v582 = vmul.f32 %v327, %v571
          %v583 = vmul.f32 %v328, %v575
          %v584 = vmul.f32 %v329, %v575
          %586 = vset.pattern.permute.xlu0 0
          %587 = vperm.xlu0 %586, %v549
          %v588 = vpop.permute.xlu0 %587
          %591 = vset.pattern.permute.xlu0 0
          %592 = vperm.xlu0 %591, %v550
          %v593 = vpop.permute.xlu0 %592
          %596 = vset.pattern.permute.xlu0 0
          %597 = vperm.xlu0 %596, %v551
          %v598 = vpop.permute.xlu0 %597
          %601 = vset.pattern.permute.xlu0 0
          %602 = vperm.xlu0 %601, %v552
          %v603 = vpop.permute.xlu0 %602
          %v605 = vadd.f32 %v577, %v588
          %v606 = vadd.f32 %v578, %v588
          %v607 = vadd.f32 %v579, %v593
          %v608 = vadd.f32 %v580, %v593
          %v609 = vadd.f32 %v581, %v598
          %v610 = vadd.f32 %v582, %v598
          %v611 = vadd.f32 %v583, %v603
          %v612 = vadd.f32 %v584, %v603
          %v613 = vld [vmem:[%s4 + $0x20] sm:$0xff]
          %v614 = vld [vmem:[%s4 + $0x28] sm:$0xff]
          %v615 = vld [vmem:[%s4 + $0x30] sm:$0xff]
          %v616 = vld [vmem:[%s4 + $0x38] sm:$0xff]
          %v617 = vld [vmem:[%s4 + $0x40] sm:$0xff]
          %v618 = vld [vmem:[%s4 + $0x48] sm:$0xff]
          %v619 = vld [vmem:[%s4 + $0x50] sm:$0xff]
          %v620 = vld [vmem:[%s4 + $0x58] sm:$0xff]
          %v621 = vld [vmem:[%s5 + $0x20] sm:$0xff]
          %v622 = vld [vmem:[%s5 + $0x28] sm:$0xff]
          %v623 = vld [vmem:[%s5 + $0x30] sm:$0xff]
          %v624 = vld [vmem:[%s5 + $0x38] sm:$0xff]
          %v625 = vld [vmem:[%s5 + $0x40] sm:$0xff]
          %v626 = vld [vmem:[%s5 + $0x48] sm:$0xff]
          %v627 = vld [vmem:[%s5 + $0x50] sm:$0xff]
          %v628 = vld [vmem:[%s5 + $0x58] sm:$0xff]
          %630 = vset.pattern.permute.xlu0 0
          %631 = vperm.xlu0 %630, %v621
          %v632 = vpop.permute.xlu0 %631
          %635 = vset.pattern.permute.xlu0 0
          %636 = vperm.xlu0 %635, %v622
          %v637 = vpop.permute.xlu0 %636
          %640 = vset.pattern.permute.xlu0 0
          %641 = vperm.xlu0 %640, %v623
          %v642 = vpop.permute.xlu0 %641
          %645 = vset.pattern.permute.xlu0 0
          %646 = vperm.xlu0 %645, %v624
          %v647 = vpop.permute.xlu0 %646
          %650 = vset.pattern.permute.xlu0 0
          %651 = vperm.xlu0 %650, %v625
          %v652 = vpop.permute.xlu0 %651
          %655 = vset.pattern.permute.xlu0 0
          %656 = vperm.xlu0 %655, %v626
          %v657 = vpop.permute.xlu0 %656
          %660 = vset.pattern.permute.xlu0 0
          %661 = vperm.xlu0 %660, %v627
          %v662 = vpop.permute.xlu0 %661
          %665 = vset.pattern.permute.xlu0 0
          %666 = vperm.xlu0 %665, %v628
          %v667 = vpop.permute.xlu0 %666
          %v670 = vsel %vm371, %v613, 0
          %v673 = vsel %vm371, %v614, 0
          %v676 = vsel %vm371, %v615, 0
          %v679 = vsel %vm371, %v616, 0
          %v682 = vsel %vm371, %v617, 0
          %v685 = vsel %vm371, %v618, 0
          %v688 = vsel %vm371, %v619, 0
          %v691 = vsel %vm371, %v620, 0
          %693 = vmatprep.subr.mxu0 %v606
          %694 = vmatpush1.msra.mxu0 %v605
          %695 = vmatprep.subr.mxu0 %v608
          %696 = vmatpush1.msra.mxu0 %v607
          %697 = vmatprep.subr.mxu0 %v610
          %698 = vmatpush1.msra.mxu0 %v609
          %699 = vmatprep.subr.mxu0 %v612
          %700 = vmatpush1.msra.mxu0 %v611
          %701 = vmatprep.subr.mxu0 0.0
          %702 = vmatpush1.msra.mxu0 0.0
          %703 = vmatprep.subr.mxu0 0.0
          %704 = vmatpush1.msra.mxu0 0.0
          %705 = vmatprep.subr.mxu0 0.0
          %706 = vmatpush1.msra.mxu0 0.0
          %707 = vmatprep.subr.mxu0 0.0
          %708 = vmatpush1.msra.mxu0 0.0
          %709 = vmatprep.subr.mxu0 0.0
          %710 = vmatpush1.msra.mxu0 0.0
          %711 = vmatprep.subr.mxu0 0.0
          %712 = vmatpush1.msra.mxu0 0.0
          %713 = vmatprep.subr.mxu0 0.0
          %714 = vmatpush1.msra.mxu0 0.0
          %715 = vmatprep.subr.mxu0 0.0
          %716 = vmatpush1.msra.mxu0 0.0
          %717 = vmatprep.subr.mxu0 0.0
          %718 = vmatpush1.msra.mxu0 0.0
          %719 = vmatprep.subr.mxu0 0.0
          %720 = vmatpush1.msra.mxu0 0.0
          %721 = vmatprep.subr.mxu0 0.0
          %722 = vmatpush1.msra.mxu0 0.0
          %723 = vmatprep.subr.mxu0 0.0
          %724 = vmatpush1.msra.mxu0 0.0
          %725 = vmatprep.subr.mxu0 0.0
          %726 = vmatpush1.msra.mxu0 0.0
          %727 = vmatprep.subr.mxu0 0.0
          %728 = vmatpush1.msra.mxu0 0.0
          %729 = vmatprep.subr.mxu0 0.0
          %730 = vmatpush1.msra.mxu0 0.0
          %731 = vmatprep.subr.mxu0 0.0
          %732 = vmatpush1.msra.mxu0 0.0
          %733 = vmatprep.subr.mxu0 0.0
          %734 = vmatpush1.msra.mxu0 0.0
          %735 = vmatprep.subr.mxu0 0.0
          %736 = vmatpush1.msra.mxu0 0.0
          %737 = vmatprep.subr.mxu0 0.0
          %738 = vmatpush1.msra.mxu0 0.0
          %739 = vmatprep.subr.mxu0 0.0
          %740 = vmatpush1.msra.mxu0 0.0
          %741 = vmatprep.subr.mxu0 0.0
          %742 = vmatpush1.msra.mxu0 0.0
          %743 = vmatprep.subr.mxu0 0.0
          %744 = vmatpush1.msra.mxu0 0.0
          %745 = vmatprep.subr.mxu0 0.0
          %746 = vmatpush1.msra.mxu0 0.0
          %747 = vmatprep.subr.mxu0 0.0
          %748 = vmatpush1.msra.mxu0 0.0
          %749 = vmatprep.subr.mxu0 0.0
          %750 = vmatpush1.msra.mxu0 0.0
          %751 = vmatprep.subr.mxu0 0.0
          %752 = vmatpush1.msra.mxu0 0.0
          %753 = vmatprep.subr.mxu0 0.0
          %754 = vmatpush1.msra.mxu0 0.0
          %755 = vmatprep.subr.mxu0 0.0
          %756 = vmatpush1.msra.mxu0 0.0
          %757 = vmatprep.mubr.f32.mxu0 0.0
          %758 = vmatmul.mubr.f32.gmra.mrb[0].mxu0 %v670
          %v759 = vpop.f32.mrb[0].mxu0
          %v760 = vadd.f32 %v632, %v759
          %v761 = vpop.f32.mrb[0].mxu0
          %v762 = vadd.f32 %v632, %v761
          %763 = vmatprep.mubr.f32.mxu0 0.0
          %764 = vmatmul.mubr.f32.gmra.mrb[0].mxu0 %v673
          %v765 = vpop.f32.mrb[0].mxu0
          %v766 = vadd.f32 %v637, %v765
          %v767 = vpop.f32.mrb[0].mxu0
          %v768 = vadd.f32 %v637, %v767
          %769 = vmatprep.mubr.f32.mxu0 0.0
          %770 = vmatmul.mubr.f32.gmra.mrb[0].mxu0 %v676
          %v771 = vpop.f32.mrb[0].mxu0
          %v772 = vadd.f32 %v642, %v771
          %v773 = vpop.f32.mrb[0].mxu0
          %v774 = vadd.f32 %v642, %v773
          %775 = vmatprep.mubr.f32.mxu0 0.0
          %776 = vmatmul.mubr.f32.gmra.mrb[0].mxu0 %v679
          %v777 = vpop.f32.mrb[0].mxu0
          %v778 = vadd.f32 %v647, %v777
          %v779 = vpop.f32.mrb[0].mxu0
          %v780 = vadd.f32 %v647, %v779
          %781 = vmatprep.mubr.f32.mxu0 0.0
          %782 = vmatmul.mubr.f32.gmra.mrb[0].mxu0 %v682
          %v783 = vpop.f32.mrb[0].mxu0
          %v784 = vadd.f32 %v652, %v783
          %v785 = vpop.f32.mrb[0].mxu0
          %v786 = vadd.f32 %v652, %v785
          %787 = vmatprep.mubr.f32.mxu0 0.0
          %788 = vmatmul.mubr.f32.gmra.mrb[0].mxu0 %v685
          %v789 = vpop.f32.mrb[0].mxu0
          %v790 = vadd.f32 %v657, %v789
          %v791 = vpop.f32.mrb[0].mxu0
          %v792 = vadd.f32 %v657, %v791
          %793 = vmatprep.mubr.f32.mxu0 0.0
          %794 = vmatmul.mubr.f32.gmra.mrb[0].mxu0 %v688
          %v795 = vpop.f32.mrb[0].mxu0
          %v796 = vadd.f32 %v662, %v795
          %v797 = vpop.f32.mrb[0].mxu0
          %v798 = vadd.f32 %v662, %v797
          %799 = vmatprep.mubr.f32.mxu0 0.0
          %800 = vmatmul.mubr.f32.gmra.mrb[0].mxu0 %v691
          %v801 = vpop.f32.mrb[0].mxu0
          %v802 = vadd.f32 %v667, %v801
          %v803 = vpop.f32.mrb[0].mxu0
          %v804 = vadd.f32 %v667, %v803
          %805 = vdwg.mxu0
          %806 = vst [vmem:[#allocation2] sm:$0xff] %v760
          %807 = vst [vmem:[#allocation2 + $0x8] sm:$0xff] %v762
          %808 = vst [vmem:[#allocation2 + $0x10] sm:$0xff] %v766
          %809 = vst [vmem:[#allocation2 + $0x18] sm:$0xff] %v768
          %810 = vst [vmem:[#allocation2 + $0x20] sm:$0xff] %v772
          %811 = vst [vmem:[#allocation2 + $0x28] sm:$0xff] %v774
          %812 = vst [vmem:[#allocation2 + $0x30] sm:$0xff] %v778
          %813 = vst [vmem:[#allocation2 + $0x38] sm:$0xff] %v780
          %814 = vst [vmem:[#allocation3] sm:$0xff] %v784
          %815 = vst [vmem:[#allocation3 + $0x8] sm:$0xff] %v786
          %816 = vst [vmem:[#allocation3 + $0x10] sm:$0xff] %v790
          %817 = vst [vmem:[#allocation3 + $0x18] sm:$0xff] %v792
          %818 = vst [vmem:[#allocation3 + $0x20] sm:$0xff] %v796
          %819 = vst [vmem:[#allocation3 + $0x28] sm:$0xff] %v798
          %820 = vst [vmem:[#allocation3 + $0x30] sm:$0xff] %v802
          %821 = vst [vmem:[#allocation3 + $0x38] sm:$0xff] %v804
        $region56: #{tpu_custom_call.1} parent=51 // pred_fallthru
          _
        %s822 = smul.u32 %s27, 128
        %s823 = sshra.s32 %s822, 7
        %s824 = sand.u32 %s822, 127
        %s825 = smul.addr %s823, 8
        %s826 = scalar_lea.vmem %s317, %s825
        %v827 = vld [vmem:[%s826] sm:$0xff]
        %v828 = vld [vmem:[%s826 + $0x10] sm:$0xff]
        %v829 = vld [vmem:[%s826 + $0x20] sm:$0xff]
        %v830 = vld [vmem:[%s826 + $0x30] sm:$0xff]
        %v831 = vld [vmem:[#allocation4] sm:$0xff]
        %v832 = vld [vmem:[#allocation4 + $0x8] sm:$0xff]
        %v833 = vld [vmem:[#allocation4 + $0x10] sm:$0xff]
        %v834 = vld [vmem:[#allocation4 + $0x18] sm:$0xff]
        %836 = vset.pattern.permute.xlu0 0
        %837 = vperm.xlu0 %836, %v831
        %v838 = vpop.permute.xlu0 %837
        %841 = vset.pattern.permute.xlu0 0
        %842 = vperm.xlu0 %841, %v832
        %v843 = vpop.permute.xlu0 %842
        %846 = vset.pattern.permute.xlu0 0
        %847 = vperm.xlu0 %846, %v833
        %v848 = vpop.permute.xlu0 %847
        %851 = vset.pattern.permute.xlu0 0
        %852 = vperm.xlu0 %851, %v834
        %v853 = vpop.permute.xlu0 %852
        %v855 = vmul.f32 %v827, %v838
        %v856 = vmul.f32 %v828, %v843
        %v857 = vmul.f32 %v829, %v848
        %v858 = vmul.f32 %v830, %v853
        %v859 = vld [vmem:[#allocation5] sm:$0xff]
        %v860 = vld [vmem:[#allocation5 + $0x8] sm:$0xff]
        %v861 = vld [vmem:[#allocation5 + $0x10] sm:$0xff]
        %v862 = vld [vmem:[#allocation5 + $0x18] sm:$0xff]
        %864 = vset.pattern.permute.xlu0 0
        %865 = vperm.xlu0 %864, %v859
        %v866 = vpop.permute.xlu0 %865
        %869 = vset.pattern.permute.xlu0 0
        %870 = vperm.xlu0 %869, %v860
        %v871 = vpop.permute.xlu0 %870
        %874 = vset.pattern.permute.xlu0 0
        %875 = vperm.xlu0 %874, %v861
        %v876 = vpop.permute.xlu0 %875
        %879 = vset.pattern.permute.xlu0 0
        %880 = vperm.xlu0 %879, %v862
        %v881 = vpop.permute.xlu0 %880
        %v883 = vadd.f32 %v855, %v866
        %v884 = vadd.f32 %v856, %v871
        %v885 = vadd.f32 %v857, %v876
        %v886 = vadd.f32 %v858, %v881
        %v887 = vld [vmem:[%s4] sm:$0xff]
        %v888 = vld [vmem:[%s4 + $0x8] sm:$0xff]
        %v889 = vld [vmem:[%s4 + $0x10] sm:$0xff]
        %v890 = vld [vmem:[%s4 + $0x18] sm:$0xff]
        %v891 = vld [vmem:[%s5] sm:$0xff]
        %v892 = vld [vmem:[%s5 + $0x8] sm:$0xff]
        %v893 = vld [vmem:[%s5 + $0x10] sm:$0xff]
        %v894 = vld [vmem:[%s5 + $0x18] sm:$0xff]
        %896 = vset.pattern.permute.xlu0 0
        %897 = vperm.xlu0 %896, %v891
        %v898 = vpop.permute.xlu0 %897
        %901 = vset.pattern.permute.xlu0 0
        %902 = vperm.xlu0 %901, %v892
        %v903 = vpop.permute.xlu0 %902
        %906 = vset.pattern.permute.xlu0 0
        %907 = vperm.xlu0 %906, %v893
        %v908 = vpop.permute.xlu0 %907
        %911 = vset.pattern.permute.xlu0 0
        %912 = vperm.xlu0 %911, %v894
        %v913 = vpop.permute.xlu0 %912
        %vm915 = vcmask 261120
        %v917 = vsel %vm915, %v887, 0
        %v920 = vsel %vm915, %v888, 0
        %v923 = vsel %vm915, %v889, 0
        %v926 = vsel %vm915, %v890, 0
        %928 = vmatprep.subr.mxu0 0.0
        %929 = vmatpush1.msra.mxu0 %v883
        %930 = vmatprep.subr.mxu0 0.0
        %931 = vmatpush1.msra.mxu0 %v884
        %932 = vmatprep.subr.mxu0 0.0
        %933 = vmatpush1.msra.mxu0 %v885
        %934 = vmatprep.subr.mxu0 0.0
        %935 = vmatpush1.msra.mxu0 %v886
        %936 = vmatprep.subr.mxu0 0.0
        %937 = vmatpush1.msra.mxu0 0.0
        %938 = vmatprep.subr.mxu0 0.0
        %939 = vmatpush1.msra.mxu0 0.0
        %940 = vmatprep.subr.mxu0 0.0
        %941 = vmatpush1.msra.mxu0 0.0
        %942 = vmatprep.subr.mxu0 0.0
        %943 = vmatpush1.msra.mxu0 0.0
        %944 = vmatprep.subr.mxu0 0.0
        %945 = vmatpush1.msra.mxu0 0.0
        %946 = vmatprep.subr.mxu0 0.0
        %947 = vmatpush1.msra.mxu0 0.0
        %948 = vmatprep.subr.mxu0 0.0
        %949 = vmatpush1.msra.mxu0 0.0
        %950 = vmatprep.subr.mxu0 0.0
        %951 = vmatpush1.msra.mxu0 0.0
        %952 = vmatprep.subr.mxu0 0.0
        %953 = vmatpush1.msra.mxu0 0.0
        %954 = vmatprep.subr.mxu0 0.0
        %955 = vmatpush1.msra.mxu0 0.0
        %956 = vmatprep.subr.mxu0 0.0
        %957 = vmatpush1.msra.mxu0 0.0
        %958 = vmatprep.subr.mxu0 0.0
        %959 = vmatpush1.msra.mxu0 0.0
        %960 = vmatprep.subr.mxu0 0.0
        %961 = vmatpush1.msra.mxu0 0.0
        %962 = vmatprep.subr.mxu0 0.0
        %963 = vmatpush1.msra.mxu0 0.0
        %964 = vmatprep.subr.mxu0 0.0
        %965 = vmatpush1.msra.mxu0 0.0
        %966 = vmatprep.subr.mxu0 0.0
        %967 = vmatpush1.msra.mxu0 0.0
        %968 = vmatprep.subr.mxu0 0.0
        %969 = vmatpush1.msra.mxu0 0.0
        %970 = vmatprep.subr.mxu0 0.0
        %971 = vmatpush1.msra.mxu0 0.0
        %972 = vmatprep.subr.mxu0 0.0
        %973 = vmatpush1.msra.mxu0 0.0
        %974 = vmatprep.subr.mxu0 0.0
        %975 = vmatpush1.msra.mxu0 0.0
        %976 = vmatprep.subr.mxu0 0.0
        %977 = vmatpush1.msra.mxu0 0.0
        %978 = vmatprep.subr.mxu0 0.0
        %979 = vmatpush1.msra.mxu0 0.0
        %980 = vmatprep.subr.mxu0 0.0
        %981 = vmatpush1.msra.mxu0 0.0
        %982 = vmatprep.subr.mxu0 0.0
        %983 = vmatpush1.msra.mxu0 0.0
        %984 = vmatprep.subr.mxu0 0.0
        %985 = vmatpush1.msra.mxu0 0.0
        %986 = vmatprep.subr.mxu0 0.0
        %987 = vmatpush1.msra.mxu0 0.0
        %988 = vmatprep.subr.mxu0 0.0
        %989 = vmatpush1.msra.mxu0 0.0
        %990 = vmatprep.subr.mxu0 0.0
        %991 = vmatpush1.msra.mxu0 0.0
        %992 = vmatprep.mubr.f32.mxu0 0.0
        %993 = vmatmul.mubr.f32.gmra.mrb[0].mxu0 %v917
        %v994 = vpop.f32.mrb[0].mxu0
        %v995 = vadd.f32 %v898, %v994
        %v996 = vpop.f32.mrb[0].mxu0
        %997 = vmatprep.mubr.f32.mxu0 0.0
        %998 = vmatmul.mubr.f32.gmra.mrb[0].mxu0 %v920
        %v999 = vpop.f32.mrb[0].mxu0
        %v1000 = vadd.f32 %v903, %v999
        %v1001 = vpop.f32.mrb[0].mxu0
        %1002 = vmatprep.mubr.f32.mxu0 0.0
        %1003 = vmatmul.mubr.f32.gmra.mrb[0].mxu0 %v923
        %v1004 = vpop.f32.mrb[0].mxu0
        %v1005 = vadd.f32 %v908, %v1004
        %v1006 = vpop.f32.mrb[0].mxu0
        %1007 = vmatprep.mubr.f32.mxu0 0.0
        %1008 = vmatmul.mubr.f32.gmra.mrb[0].mxu0 %v926
        %v1009 = vpop.f32.mrb[0].mxu0
        %v1010 = vadd.f32 %v913, %v1009
        %v1011 = vpop.f32.mrb[0].mxu0
        %1012 = vdwg.mxu0
        %v1013 = vld [vmem:[#allocation2] sm:$0xff]
        %v1014 = vld [vmem:[#allocation2 + $0x8] sm:$0xff]
        %v1015 = vld [vmem:[#allocation2 + $0x10] sm:$0xff]
        %v1016 = vld [vmem:[#allocation2 + $0x18] sm:$0xff]
        %v1017 = vld [vmem:[#allocation2 + $0x20] sm:$0xff]
        %v1018 = vld [vmem:[#allocation2 + $0x28] sm:$0xff]
        %v1019 = vld [vmem:[#allocation2 + $0x30] sm:$0xff]
        %v1020 = vld [vmem:[#allocation2 + $0x38] sm:$0xff]
        %1021 = vxpose.xlu0.b32.start [1/16] %v1013, 128
        %1022 = vxpose.xlu0.b32.cont [2/16] %v1015, 128
        %1023 = vxpose.xlu0.b32.cont [3/16] %v1017, 128
        %1024 = vxpose.xlu0.b32.cont [4/16] %v1019, 128
        %1025 = vxpose.xlu0.b32.cont [5/16] 0.0, 128
        %1026 = vxpose.xlu0.b32.cont [6/16] 0.0, 128
        %1027 = vxpose.xlu0.b32.cont [7/16] 0.0, 128
        %1028 = vxpose.xlu0.b32.cont [8/16] 0.0, 128
        %1029 = vxpose.xlu0.b32.cont [9/16] 0.0, 128
        %1030 = vxpose.xlu0.b32.cont [10/16] 0.0, 128
        %1031 = vxpose.xlu0.b32.cont [11/16] 0.0, 128
        %1032 = vxpose.xlu0.b32.cont [12/16] 0.0, 128
        %1033 = vxpose.xlu0.b32.cont [13/16] 0.0, 128
        %1034 = vxpose.xlu0.b32.cont [14/16] 0.0, 128
        %1035 = vxpose.xlu0.b32.cont [15/16] 0.0, 128
        %1036 = vxpose.xlu0.b32.end [16/16] 0.0, 128
        %v1037 = vpop.trf.xlu0
        %v1038 = vpop.trf.xlu0
        %v1039 = vpop.trf.xlu0
        %v1040 = vpop.trf.xlu0
        %v1041 = vpop.trf.xlu0
        %v1042 = vpop.trf.xlu0
        %v1043 = vpop.trf.xlu0
        %v1044 = vpop.trf.xlu0
        %v1045 = vpop.trf.xlu0
        %v1046 = vpop.trf.xlu0
        %v1047 = vpop.trf.xlu0
        %v1048 = vpop.trf.xlu0
        %v1049 = vpop.trf.xlu0
        %v1050 = vpop.trf.xlu0
        %v1051 = vpop.trf.xlu0
        %v1052 = vpop.trf.xlu0
        %1053 = vxpose.xlu0.b32.start [1/16] %v1014, 128
        %1054 = vxpose.xlu0.b32.cont [2/16] %v1016, 128
        %1055 = vxpose.xlu0.b32.cont [3/16] %v1018, 128
        %1056 = vxpose.xlu0.b32.cont [4/16] %v1020, 128
        %1057 = vxpose.xlu0.b32.cont [5/16] 0.0, 128
        %1058 = vxpose.xlu0.b32.cont [6/16] 0.0, 128
        %1059 = vxpose.xlu0.b32.cont [7/16] 0.0, 128
        %1060 = vxpose.xlu0.b32.cont [8/16] 0.0, 128
        %1061 = vxpose.xlu0.b32.cont [9/16] 0.0, 128
        %1062 = vxpose.xlu0.b32.cont [10/16] 0.0, 128
        %1063 = vxpose.xlu0.b32.cont [11/16] 0.0, 128
        %1064 = vxpose.xlu0.b32.cont [12/16] 0.0, 128
        %1065 = vxpose.xlu0.b32.cont [13/16] 0.0, 128
        %1066 = vxpose.xlu0.b32.cont [14/16] 0.0, 128
        %1067 = vxpose.xlu0.b32.cont [15/16] 0.0, 128
        %1068 = vxpose.xlu0.b32.end [16/16] 0.0, 128
        %v1069 = vpop.trf.xlu0
        %v1070 = vpop.trf.xlu0
        %v1071 = vpop.trf.xlu0
        %v1072 = vpop.trf.xlu0
        %v1073 = vpop.trf.xlu0
        %v1074 = vpop.trf.xlu0
        %v1075 = vpop.trf.xlu0
        %v1076 = vpop.trf.xlu0
        %v1077 = vpop.trf.xlu0
        %v1078 = vpop.trf.xlu0
        %v1079 = vpop.trf.xlu0
        %v1080 = vpop.trf.xlu0
        %v1081 = vpop.trf.xlu0
        %v1082 = vpop.trf.xlu0
        %v1083 = vpop.trf.xlu0
        %v1084 = vpop.trf.xlu0
        %v1086 = vsel %vm915, %v1037, 0
        %v1089 = vsel %vm915, %v1038, 0
        %v1092 = vsel %vm915, %v1039, 0
        %v1095 = vsel %vm915, %v1040, 0
        %v1098 = vsel %vm915, %v1041, 0
        %v1101 = vsel %vm915, %v1042, 0
        %v1104 = vsel %vm915, %v1043, 0
        %v1107 = vsel %vm915, %v1044, 0
        %v1110 = vsel %vm915, %v1045, 0
        %v1113 = vsel %vm915, %v1046, 0
        %v1116 = vsel %vm915, %v1047, 0
        %v1119 = vsel %vm915, %v1048, 0
        %v1122 = vsel %vm915, %v1049, 0
        %v1125 = vsel %vm915, %v1050, 0
        %v1128 = vsel %vm915, %v1051, 0
        %v1131 = vsel %vm915, %v1052, 0
        %v1134 = vsel %vm915, %v1069, 0
        %v1137 = vsel %vm915, %v1070, 0
        %v1140 = vsel %vm915, %v1071, 0
        %v1143 = vsel %vm915, %v1072, 0
        %v1146 = vsel %vm915, %v1073, 0
        %v1149 = vsel %vm915, %v1074, 0
        %v1152 = vsel %vm915, %v1075, 0
        %v1155 = vsel %vm915, %v1076, 0
        %v1158 = vsel %vm915, %v1077, 0
        %v1161 = vsel %vm915, %v1078, 0
        %v1164 = vsel %vm915, %v1079, 0
        %v1167 = vsel %vm915, %v1080, 0
        %v1170 = vsel %vm915, %v1081, 0
        %v1173 = vsel %vm915, %v1082, 0
        %v1176 = vsel %vm915, %v1083, 0
        %v1179 = vsel %vm915, %v1084, 0
        %1181 = vmatprep.subr.mxu0 0.0
        %1182 = vmatpush1.msra.mxu0 %v995
        %1183 = vmatprep.subr.mxu0 0.0
        %1184 = vmatpush1.msra.mxu0 %v1000
        %1185 = vmatprep.subr.mxu0 0.0
        %1186 = vmatpush1.msra.mxu0 %v1005
        %1187 = vmatprep.subr.mxu0 0.0
        %1188 = vmatpush1.msra.mxu0 %v1010
        %1189 = vmatprep.subr.mxu0 0.0
        %1190 = vmatpush1.msra.mxu0 0.0
        %1191 = vmatprep.subr.mxu0 0.0
        %1192 = vmatpush1.msra.mxu0 0.0
        %1193 = vmatprep.subr.mxu0 0.0
        %1194 = vmatpush1.msra.mxu0 0.0
        %1195 = vmatprep.subr.mxu0 0.0
        %1196 = vmatpush1.msra.mxu0 0.0
        %1197 = vmatprep.subr.mxu0 0.0
        %1198 = vmatpush1.msra.mxu0 0.0
        %1199 = vmatprep.subr.mxu0 0.0
        %1200 = vmatpush1.msra.mxu0 0.0
        %1201 = vmatprep.subr.mxu0 0.0
        %1202 = vmatpush1.msra.mxu0 0.0
        %1203 = vmatprep.subr.mxu0 0.0
        %1204 = vmatpush1.msra.mxu0 0.0
        %1205 = vmatprep.subr.mxu0 0.0
        %1206 = vmatpush1.msra.mxu0 0.0
        %1207 = vmatprep.subr.mxu0 0.0
        %1208 = vmatpush1.msra.mxu0 0.0
        %1209 = vmatprep.subr.mxu0 0.0
        %1210 = vmatpush1.msra.mxu0 0.0
        %1211 = vmatprep.subr.mxu0 0.0
        %1212 = vmatpush1.msra.mxu0 0.0
        %1213 = vmatprep.subr.mxu0 0.0
        %1214 = vmatpush1.msra.mxu0 0.0
        %1215 = vmatprep.subr.mxu0 0.0
        %1216 = vmatpush1.msra.mxu0 0.0
        %1217 = vmatprep.subr.mxu0 0.0
        %1218 = vmatpush1.msra.mxu0 0.0
        %1219 = vmatprep.subr.mxu0 0.0
        %1220 = vmatpush1.msra.mxu0 0.0
        %1221 = vmatprep.subr.mxu0 0.0
        %1222 = vmatpush1.msra.mxu0 0.0
        %1223 = vmatprep.subr.mxu0 0.0
        %1224 = vmatpush1.msra.mxu0 0.0
        %1225 = vmatprep.subr.mxu0 0.0
        %1226 = vmatpush1.msra.mxu0 0.0
        %1227 = vmatprep.subr.mxu0 0.0
        %1228 = vmatpush1.msra.mxu0 0.0
        %1229 = vmatprep.subr.mxu0 0.0
        %1230 = vmatpush1.msra.mxu0 0.0
        %1231 = vmatprep.subr.mxu0 0.0
        %1232 = vmatpush1.msra.mxu0 0.0
        %1233 = vmatprep.subr.mxu0 0.0
        %1234 = vmatpush1.msra.mxu0 0.0
        %1235 = vmatprep.subr.mxu0 0.0
        %1236 = vmatpush1.msra.mxu0 0.0
        %1237 = vmatprep.subr.mxu0 0.0
        %1238 = vmatpush1.msra.mxu0 0.0
        %1239 = vmatprep.subr.mxu0 0.0
        %1240 = vmatpush1.msra.mxu0 0.0
        %1241 = vmatprep.subr.mxu0 0.0
        %1242 = vmatpush1.msra.mxu0 0.0
        %1243 = vmatprep.subr.mxu0 0.0
        %1244 = vmatpush1.msra.mxu0 0.0
        %1245 = vmatprep.mubr.f32.mxu0 0.0
        %1246 = vmatmul.mubr.f32.gmra.mrb[0].mxu0 %v1086
        %v1247 = vpop.f32.mrb[0].mxu0
        %v1248 = vadd.f32 0.0, %v1247
        %v1249 = vpop.f32.mrb[0].mxu0
        %1250 = vmatprep.mubr.f32.mxu0 0.0
        %1251 = vmatmul.mubr.f32.gmra.mrb[0].mxu0 %v1089
        %v1252 = vpop.f32.mrb[0].mxu0
        %v1253 = vadd.f32 0.0, %v1252
        %v1254 = vpop.f32.mrb[0].mxu0
        %1255 = vmatprep.mubr.f32.mxu0 0.0
        %1256 = vmatmul.mubr.f32.gmra.mrb[0].mxu0 %v1092
        %v1257 = vpop.f32.mrb[0].mxu0
        %v1258 = vadd.f32 0.0, %v1257
        %v1259 = vpop.f32.mrb[0].mxu0
        %1260 = vmatprep.mubr.f32.mxu0 0.0
        %1261 = vmatmul.mubr.f32.gmra.mrb[0].mxu0 %v1095
        %v1262 = vpop.f32.mrb[0].mxu0
        %v1263 = vadd.f32 0.0, %v1262
        %v1264 = vpop.f32.mrb[0].mxu0
        %1265 = vmatprep.mubr.f32.mxu0 0.0
        %1266 = vmatmul.mubr.f32.gmra.mrb[0].mxu0 %v1098
        %v1267 = vpop.f32.mrb[0].mxu0
        %v1268 = vadd.f32 0.0, %v1267
        %v1269 = vpop.f32.mrb[0].mxu0
        %1270 = vmatprep.mubr.f32.mxu0 0.0
        %1271 = vmatmul.mubr.f32.gmra.mrb[0].mxu0 %v1101
        %v1272 = vpop.f32.mrb[0].mxu0
        %v1273 = vadd.f32 0.0, %v1272
        %v1274 = vpop.f32.mrb[0].mxu0
        %1275 = vmatprep.mubr.f32.mxu0 0.0
        %1276 = vmatmul.mubr.f32.gmra.mrb[0].mxu0 %v1104
        %v1277 = vpop.f32.mrb[0].mxu0
        %v1278 = vadd.f32 0.0, %v1277
        %v1279 = vpop.f32.mrb[0].mxu0
        %1280 = vmatprep.mubr.f32.mxu0 0.0
        %1281 = vmatmul.mubr.f32.gmra.mrb[0].mxu0 %v1107
        %v1282 = vpop.f32.mrb[0].mxu0
        %v1283 = vadd.f32 0.0, %v1282
        %v1284 = vpop.f32.mrb[0].mxu0
        %1285 = vmatprep.mubr.f32.mxu0 0.0
        %1286 = vmatmul.mubr.f32.gmra.mrb[0].mxu0 %v1110
        %v1287 = vpop.f32.mrb[0].mxu0
        %v1288 = vadd.f32 0.0, %v1287
        %v1289 = vpop.f32.mrb[0].mxu0
        %1290 = vmatprep.mubr.f32.mxu0 0.0
        %1291 = vmatmul.mubr.f32.gmra.mrb[0].mxu0 %v1113
        %v1292 = vpop.f32.mrb[0].mxu0
        %v1293 = vadd.f32 0.0, %v1292
        %v1294 = vpop.f32.mrb[0].mxu0
        %1295 = vmatprep.mubr.f32.mxu0 0.0
        %1296 = vmatmul.mubr.f32.gmra.mrb[0].mxu0 %v1116
        %v1297 = vpop.f32.mrb[0].mxu0
        %v1298 = vadd.f32 0.0, %v1297
        %v1299 = vpop.f32.mrb[0].mxu0
        %1300 = vmatprep.mubr.f32.mxu0 0.0
        %1301 = vmatmul.mubr.f32.gmra.mrb[0].mxu0 %v1119
        %v1302 = vpop.f32.mrb[0].mxu0
        %v1303 = vadd.f32 0.0, %v1302
        %v1304 = vpop.f32.mrb[0].mxu0
        %1305 = vmatprep.mubr.f32.mxu0 0.0
        %1306 = vmatmul.mubr.f32.gmra.mrb[0].mxu0 %v1122
        %v1307 = vpop.f32.mrb[0].mxu0
        %v1308 = vadd.f32 0.0, %v1307
        %v1309 = vpop.f32.mrb[0].mxu0
        %1310 = vmatprep.mubr.f32.mxu0 0.0
        %1311 = vmatmul.mubr.f32.gmra.mrb[0].mxu0 %v1125
        %v1312 = vpop.f32.mrb[0].mxu0
        %v1313 = vadd.f32 0.0, %v1312
        %v1314 = vpop.f32.mrb[0].mxu0
        %1315 = vmatprep.mubr.f32.mxu0 0.0
        %1316 = vmatmul.mubr.f32.gmra.mrb[0].mxu0 %v1128
        %v1317 = vpop.f32.mrb[0].mxu0
        %v1318 = vadd.f32 0.0, %v1317
        %v1319 = vpop.f32.mrb[0].mxu0
        %1320 = vmatprep.mubr.f32.mxu0 0.0
        %1321 = vmatmul.mubr.f32.gmra.mrb[0].mxu0 %v1131
        %v1322 = vpop.f32.mrb[0].mxu0
        %v1323 = vadd.f32 0.0, %v1322
        %v1324 = vpop.f32.mrb[0].mxu0
        %1325 = vmatprep.mubr.f32.mxu0 0.0
        %1326 = vmatmul.mubr.f32.gmra.mrb[0].mxu0 %v1134
        %v1327 = vpop.f32.mrb[0].mxu0
        %v1328 = vadd.f32 0.0, %v1327
        %v1329 = vpop.f32.mrb[0].mxu0
        %1330 = vmatprep.mubr.f32.mxu0 0.0
        %1331 = vmatmul.mubr.f32.gmra.mrb[0].mxu0 %v1137
        %v1332 = vpop.f32.mrb[0].mxu0
        %v1333 = vadd.f32 0.0, %v1332
        %v1334 = vpop.f32.mrb[0].mxu0
        %1335 = vmatprep.mubr.f32.mxu0 0.0
        %1336 = vmatmul.mubr.f32.gmra.mrb[0].mxu0 %v1140
        %v1337 = vpop.f32.mrb[0].mxu0
        %v1338 = vadd.f32 0.0, %v1337
        %v1339 = vpop.f32.mrb[0].mxu0
        %1340 = vmatprep.mubr.f32.mxu0 0.0
        %1341 = vmatmul.mubr.f32.gmra.mrb[0].mxu0 %v1143
        %v1342 = vpop.f32.mrb[0].mxu0
        %v1343 = vadd.f32 0.0, %v1342
        %v1344 = vpop.f32.mrb[0].mxu0
        %1345 = vmatprep.mubr.f32.mxu0 0.0
        %1346 = vmatmul.mubr.f32.gmra.mrb[0].mxu0 %v1146
        %v1347 = vpop.f32.mrb[0].mxu0
        %v1348 = vadd.f32 0.0, %v1347
        %v1349 = vpop.f32.mrb[0].mxu0
        %1350 = vmatprep.mubr.f32.mxu0 0.0
        %1351 = vmatmul.mubr.f32.gmra.mrb[0].mxu0 %v1149
        %v1352 = vpop.f32.mrb[0].mxu0
        %v1353 = vadd.f32 0.0, %v1352
        %v1354 = vpop.f32.mrb[0].mxu0
        %1355 = vmatprep.mubr.f32.mxu0 0.0
        %1356 = vmatmul.mubr.f32.gmra.mrb[0].mxu0 %v1152
        %v1357 = vpop.f32.mrb[0].mxu0
        %v1358 = vadd.f32 0.0, %v1357
        %v1359 = vpop.f32.mrb[0].mxu0
        %1360 = vmatprep.mubr.f32.mxu0 0.0
        %1361 = vmatmul.mubr.f32.gmra.mrb[0].mxu0 %v1155
        %v1362 = vpop.f32.mrb[0].mxu0
        %v1363 = vadd.f32 0.0, %v1362
        %v1364 = vpop.f32.mrb[0].mxu0
        %1365 = vmatprep.mubr.f32.mxu0 0.0
        %1366 = vmatmul.mubr.f32.gmra.mrb[0].mxu0 %v1158
        %v1367 = vpop.f32.mrb[0].mxu0
        %v1368 = vadd.f32 0.0, %v1367
        %v1369 = vpop.f32.mrb[0].mxu0
        %1370 = vmatprep.mubr.f32.mxu0 0.0
        %1371 = vmatmul.mubr.f32.gmra.mrb[0].mxu0 %v1161
        %v1372 = vpop.f32.mrb[0].mxu0
        %v1373 = vadd.f32 0.0, %v1372
        %v1374 = vpop.f32.mrb[0].mxu0
        %1375 = vmatprep.mubr.f32.mxu0 0.0
        %1376 = vmatmul.mubr.f32.gmra.mrb[0].mxu0 %v1164
        %v1377 = vpop.f32.mrb[0].mxu0
        %v1378 = vadd.f32 0.0, %v1377
        %v1379 = vpop.f32.mrb[0].mxu0
        %1380 = vmatprep.mubr.f32.mxu0 0.0
        %1381 = vmatmul.mubr.f32.gmra.mrb[0].mxu0 %v1167
        %v1382 = vpop.f32.mrb[0].mxu0
        %v1383 = vadd.f32 0.0, %v1382
        %v1384 = vpop.f32.mrb[0].mxu0
        %1385 = vmatprep.mubr.f32.mxu0 0.0
        %1386 = vmatmul.mubr.f32.gmra.mrb[0].mxu0 %v1170
        %v1387 = vpop.f32.mrb[0].mxu0
        %v1388 = vadd.f32 0.0, %v1387
        %v1389 = vpop.f32.mrb[0].mxu0
        %1390 = vmatprep.mubr.f32.mxu0 0.0
        %1391 = vmatmul.mubr.f32.gmra.mrb[0].mxu0 %v1173
        %v1392 = vpop.f32.mrb[0].mxu0
        %v1393 = vadd.f32 0.0, %v1392
        %v1394 = vpop.f32.mrb[0].mxu0
        %1395 = vmatprep.mubr.f32.mxu0 0.0
        %1396 = vmatmul.mubr.f32.gmra.mrb[0].mxu0 %v1176
        %v1397 = vpop.f32.mrb[0].mxu0
        %v1398 = vadd.f32 0.0, %v1397
        %v1399 = vpop.f32.mrb[0].mxu0
        %1400 = vmatprep.mubr.f32.mxu0 0.0
        %1401 = vmatmul.mubr.f32.gmra.mrb[0].mxu0 %v1179
        %v1402 = vpop.f32.mrb[0].mxu0
        %v1403 = vadd.f32 0.0, %v1402
        %v1404 = vpop.f32.mrb[0].mxu0
        %1405 = vdwg.mxu0
        %v1406 = vmax.f32 %v1248, %v1268
        %v1407 = vmax.f32 %v1253, %v1273
        %v1408 = vmax.f32 %v1258, %v1278
        %v1409 = vmax.f32 %v1263, %v1283
        %v1410 = vmax.f32 %v1406, %v1288
        %v1411 = vmax.f32 %v1407, %v1293
        %v1412 = vmax.f32 %v1408, %v1298
        %v1413 = vmax.f32 %v1409, %v1303
        %v1414 = vmax.f32 %v1410, %v1308
        %v1415 = vmax.f32 %v1411, %v1313
        %v1416 = vmax.f32 %v1412, %v1318
        %v1417 = vmax.f32 %v1413, %v1323
        %v1418 = vmax.f32 %v1414, %v1328
        %v1419 = vmax.f32 %v1415, %v1333
        %v1420 = vmax.f32 %v1416, %v1338
        %v1421 = vmax.f32 %v1417, %v1343
        %v1422 = vmax.f32 %v1418, %v1348
        %v1423 = vmax.f32 %v1419, %v1353
        %v1424 = vmax.f32 %v1420, %v1358
        %v1425 = vmax.f32 %v1421, %v1363
        %v1426 = vmax.f32 %v1422, %v1368
        %v1427 = vmax.f32 %v1423, %v1373
        %v1428 = vmax.f32 %v1424, %v1378
        %v1429 = vmax.f32 %v1425, %v1383
        %v1430 = vmax.f32 %v1426, %v1388
        %v1431 = vmax.f32 %v1427, %v1393
        %v1432 = vmax.f32 %v1428, %v1398
        %v1433 = vmax.f32 %v1429, %v1403
        %v1434 = vmax.f32 %v1430, %v1431
        %v1435 = vmax.f32 %v1432, %v1433
        %v1436 = vmax.f32 %v1434, %v1435
        %v1437 = vrot.slane %v1436, 4
        %v1438 = vmax.f32 %v1436, %v1437
        %v1439 = vrot.slane %v1438, 2
        %v1440 = vmax.f32 %v1438, %v1439
        %v1441 = vrot.slane %v1440, 1
        %v1442 = vmax.f32 %v1440, %v1441
        %v1443 = vsub.f32 %v1248, %v1442
        %v1444 = vsub.f32 %v1253, %v1442
        %v1445 = vsub.f32 %v1258, %v1442
        %v1446 = vsub.f32 %v1263, %v1442
        %v1447 = vsub.f32 %v1268, %v1442
        %v1448 = vsub.f32 %v1273, %v1442
        %v1449 = vsub.f32 %v1278, %v1442
        %v1450 = vsub.f32 %v1283, %v1442
        %v1451 = vsub.f32 %v1288, %v1442
        %v1452 = vsub.f32 %v1293, %v1442
        %v1453 = vsub.f32 %v1298, %v1442
        %v1454 = vsub.f32 %v1303, %v1442
        %v1455 = vsub.f32 %v1308, %v1442
        %v1456 = vsub.f32 %v1313, %v1442
        %v1457 = vsub.f32 %v1318, %v1442
        %v1458 = vsub.f32 %v1323, %v1442
        %v1459 = vsub.f32 %v1328, %v1442
        %v1460 = vsub.f32 %v1333, %v1442
        %v1461 = vsub.f32 %v1338, %v1442
        %v1462 = vsub.f32 %v1343, %v1442
        %v1463 = vsub.f32 %v1348, %v1442
        %v1464 = vsub.f32 %v1353, %v1442
        %v1465 = vsub.f32 %v1358, %v1442
        %v1466 = vsub.f32 %v1363, %v1442
        %v1467 = vsub.f32 %v1368, %v1442
        %v1468 = vsub.f32 %v1373, %v1442
        %v1469 = vsub.f32 %v1378, %v1442
        %v1470 = vsub.f32 %v1383, %v1442
        %v1471 = vsub.f32 %v1388, %v1442
        %v1472 = vsub.f32 %v1393, %v1442
        %v1473 = vsub.f32 %v1398, %v1442
        %v1474 = vsub.f32 %v1403, %v1442
        %v1475 = vmul.f32 %v1443, 1.442695
        %v1476 = vpow.pop %v1475
        %v1477 = vmul.f32 %v1444, 1.442695
        %v1478 = vpow.pop %v1477
        %v1479 = vmul.f32 %v1445, 1.442695
        %v1480 = vpow.pop %v1479
        %v1481 = vmul.f32 %v1446, 1.442695
        %v1482 = vpow.pop %v1481
        %v1483 = vmul.f32 %v1447, 1.442695
        %v1484 = vpow.pop %v1483
        %v1485 = vmul.f32 %v1448, 1.442695
        %v1486 = vpow.pop %v1485
        %v1487 = vmul.f32 %v1449, 1.442695
        %v1488 = vpow.pop %v1487
        %v1489 = vmul.f32 %v1450, 1.442695
        %v1490 = vpow.pop %v1489
        %v1491 = vmul.f32 %v1451, 1.442695
        %v1492 = vpow.pop %v1491
        %v1493 = vmul.f32 %v1452, 1.442695
        %v1494 = vpow.pop %v1493
        %v1495 = vmul.f32 %v1453, 1.442695
        %v1496 = vpow.pop %v1495
        %v1497 = vmul.f32 %v1454, 1.442695
        %v1498 = vpow.pop %v1497
        %v1499 = vmul.f32 %v1455, 1.442695
        %v1500 = vpow.pop %v1499
        %v1501 = vmul.f32 %v1456, 1.442695
        %v1502 = vpow.pop %v1501
        %v1503 = vmul.f32 %v1457, 1.442695
        %v1504 = vpow.pop %v1503
        %v1505 = vmul.f32 %v1458, 1.442695
        %v1506 = vpow.pop %v1505
        %v1507 = vmul.f32 %v1459, 1.442695
        %v1508 = vpow.pop %v1507
        %v1509 = vmul.f32 %v1460, 1.442695
        %v1510 = vpow.pop %v1509
        %v1511 = vmul.f32 %v1461, 1.442695
        %v1512 = vpow.pop %v1511
        %v1513 = vmul.f32 %v1462, 1.442695
        %v1514 = vpow.pop %v1513
        %v1515 = vmul.f32 %v1463, 1.442695
        %v1516 = vpow.pop %v1515
        %v1517 = vmul.f32 %v1464, 1.442695
        %v1518 = vpow.pop %v1517
        %v1519 = vmul.f32 %v1465, 1.442695
        %v1520 = vpow.pop %v1519
        %v1521 = vmul.f32 %v1466, 1.442695
        %v1522 = vpow.pop %v1521
        %v1523 = vmul.f32 %v1467, 1.442695
        %v1524 = vpow.pop %v1523
        %v1525 = vmul.f32 %v1468, 1.442695
        %v1526 = vpow.pop %v1525
        %v1527 = vmul.f32 %v1469, 1.442695
        %v1528 = vpow.pop %v1527
        %v1529 = vmul.f32 %v1470, 1.442695
        %v1530 = vpow.pop %v1529
        %v1531 = vmul.f32 %v1471, 1.442695
        %v1532 = vpow.pop %v1531
        %v1533 = vmul.f32 %v1472, 1.442695
        %v1534 = vpow.pop %v1533
        %v1535 = vmul.f32 %v1473, 1.442695
        %v1536 = vpow.pop %v1535
        %v1537 = vmul.f32 %v1474, 1.442695
        %v1538 = vpow.pop %v1537
        %v1539 = vadd.f32 %v1476, %v1478
        %v1540 = vadd.f32 %v1539, %v1480
        %v1541 = vadd.f32 %v1540, %v1482
        %v1542 = vadd.f32 %v1541, %v1484
        %v1543 = vadd.f32 %v1542, %v1486
        %v1544 = vadd.f32 %v1543, %v1488
        %v1545 = vadd.f32 %v1544, %v1490
        %v1546 = vadd.f32 %v1545, %v1492
        %v1547 = vadd.f32 %v1546, %v1494
        %v1548 = vadd.f32 %v1547, %v1496
        %v1549 = vadd.f32 %v1548, %v1498
        %v1550 = vadd.f32 %v1549, %v1500
        %v1551 = vadd.f32 %v1550, %v1502
        %v1552 = vadd.f32 %v1551, %v1504
        %v1553 = vadd.f32 %v1552, %v1506
        %v1554 = vadd.f32 %v1553, %v1508
        %v1555 = vadd.f32 %v1554, %v1510
        %v1556 = vadd.f32 %v1555, %v1512
        %v1557 = vadd.f32 %v1556, %v1514
        %v1558 = vadd.f32 %v1557, %v1516
        %v1559 = vadd.f32 %v1558, %v1518
        %v1560 = vadd.f32 %v1559, %v1520
        %v1561 = vadd.f32 %v1560, %v1522
        %v1562 = vadd.f32 %v1561, %v1524
        %v1563 = vadd.f32 %v1562, %v1526
        %v1564 = vadd.f32 %v1563, %v1528
        %v1565 = vadd.f32 %v1564, %v1530
        %v1566 = vadd.f32 %v1565, %v1532
        %v1567 = vadd.f32 %v1566, %v1534
        %v1568 = vadd.f32 %v1567, %v1536
        %v1569 = vadd.f32 %v1568, %v1538
        %v1570 = vrot.slane %v1569, 4
        %v1571 = vadd.f32 %v1569, %v1570
        %v1572 = vrot.slane %v1571, 2
        %v1573 = vadd.f32 %v1571, %v1572
        %v1574 = vrot.slane %v1573, 1
        %v1575 = vadd.f32 %v1573, %v1574
        %v1576 = vld [vmem:[#allocation3] sm:$0xff]
        %v1577 = vld [vmem:[#allocation3 + $0x8] sm:$0xff]
        %v1578 = vld [vmem:[#allocation3 + $0x10] sm:$0xff]
        %v1579 = vld [vmem:[#allocation3 + $0x18] sm:$0xff]
        %v1580 = vld [vmem:[#allocation3 + $0x20] sm:$0xff]
        %v1581 = vld [vmem:[#allocation3 + $0x28] sm:$0xff]
        %v1582 = vld [vmem:[#allocation3 + $0x30] sm:$0xff]
        %v1583 = vld [vmem:[#allocation3 + $0x38] sm:$0xff]
        %1584 = vmatprep.subr.mxu0 0.0
        %1585 = vmatpush1.msra.mxu0 %v1476
        %1586 = vmatprep.subr.mxu0 0.0
        %1587 = vmatpush1.msra.mxu0 %v1478
        %1588 = vmatprep.subr.mxu0 0.0
        %1589 = vmatpush1.msra.mxu0 %v1480
        %1590 = vmatprep.subr.mxu0 0.0
        %1591 = vmatpush1.msra.mxu0 %v1482
        %1592 = vmatprep.subr.mxu0 0.0
        %1593 = vmatpush1.msra.mxu0 %v1484
        %1594 = vmatprep.subr.mxu0 0.0
        %1595 = vmatpush1.msra.mxu0 %v1486
        %1596 = vmatprep.subr.mxu0 0.0
        %1597 = vmatpush1.msra.mxu0 %v1488
        %1598 = vmatprep.subr.mxu0 0.0
        %1599 = vmatpush1.msra.mxu0 %v1490
        %1600 = vmatprep.subr.mxu0 0.0
        %1601 = vmatpush1.msra.mxu0 %v1492
        %1602 = vmatprep.subr.mxu0 0.0
        %1603 = vmatpush1.msra.mxu0 %v1494
        %1604 = vmatprep.subr.mxu0 0.0
        %1605 = vmatpush1.msra.mxu0 %v1496
        %1606 = vmatprep.subr.mxu0 0.0
        %1607 = vmatpush1.msra.mxu0 %v1498
        %1608 = vmatprep.subr.mxu0 0.0
        %1609 = vmatpush1.msra.mxu0 %v1500
        %1610 = vmatprep.subr.mxu0 0.0
        %1611 = vmatpush1.msra.mxu0 %v1502
        %1612 = vmatprep.subr.mxu0 0.0
        %1613 = vmatpush1.msra.mxu0 %v1504
        %1614 = vmatprep.subr.mxu0 0.0
        %1615 = vmatpush1.msra.mxu0 %v1506
        %1616 = vmatprep.subr.mxu0 0.0
        %1617 = vmatpush1.msra.mxu0 %v1508
        %1618 = vmatprep.subr.mxu0 0.0
        %1619 = vmatpush1.msra.mxu0 %v1510
        %1620 = vmatprep.subr.mxu0 0.0
        %1621 = vmatpush1.msra.mxu0 %v1512
        %1622 = vmatprep.subr.mxu0 0.0
        %1623 = vmatpush1.msra.mxu0 %v1514
        %1624 = vmatprep.subr.mxu0 0.0
        %1625 = vmatpush1.msra.mxu0 %v1516
        %1626 = vmatprep.subr.mxu0 0.0
        %1627 = vmatpush1.msra.mxu0 %v1518
        %1628 = vmatprep.subr.mxu0 0.0
        %1629 = vmatpush1.msra.mxu0 %v1520
        %1630 = vmatprep.subr.mxu0 0.0
        %1631 = vmatpush1.msra.mxu0 %v1522
        %1632 = vmatprep.subr.mxu0 0.0
        %1633 = vmatpush1.msra.mxu0 %v1524
        %1634 = vmatprep.subr.mxu0 0.0
        %1635 = vmatpush1.msra.mxu0 %v1526
        %1636 = vmatprep.subr.mxu0 0.0
        %1637 = vmatpush1.msra.mxu0 %v1528
        %1638 = vmatprep.subr.mxu0 0.0
        %1639 = vmatpush1.msra.mxu0 %v1530
        %1640 = vmatprep.subr.mxu0 0.0
        %1641 = vmatpush1.msra.mxu0 %v1532
        %1642 = vmatprep.subr.mxu0 0.0
        %1643 = vmatpush1.msra.mxu0 %v1534
        %1644 = vmatprep.subr.mxu0 0.0
        %1645 = vmatpush1.msra.mxu0 %v1536
        %1646 = vmatprep.subr.mxu0 0.0
        %1647 = vmatpush1.msra.mxu0 %v1538
        %1648 = vmatprep.mubr.f32.mxu0 %v1577
        %1649 = vmatmul.mubr.f32.gmra.mrb[0].mxu0 %v1576
        %v1650 = vpop.f32.mrb[0].mxu0
        %v1651 = vadd.f32 0.0, %v1650
        %v1652 = vpop.f32.mrb[0].mxu0
        %1653 = vmatprep.mubr.f32.mxu0 %v1579
        %1654 = vmatmul.mubr.f32.gmra.mrb[0].mxu0 %v1578
        %v1655 = vpop.f32.mrb[0].mxu0
        %v1656 = vadd.f32 0.0, %v1655
        %v1657 = vpop.f32.mrb[0].mxu0
        %1658 = vmatprep.mubr.f32.mxu0 %v1581
        %1659 = vmatmul.mubr.f32.gmra.mrb[0].mxu0 %v1580
        %v1660 = vpop.f32.mrb[0].mxu0
        %v1661 = vadd.f32 0.0, %v1660
        %v1662 = vpop.f32.mrb[0].mxu0
        %1663 = vmatprep.mubr.f32.mxu0 %v1583
        %1664 = vmatmul.mubr.f32.gmra.mrb[0].mxu0 %v1582
        %v1665 = vpop.f32.mrb[0].mxu0
        %v1666 = vadd.f32 0.0, %v1665
        %v1667 = vpop.f32.mrb[0].mxu0
        %1668 = vdwg.mxu0
        %v1669 = vrcp.pop %v1575
        %v1670 = vmul.f32 %v1651, %v1669
        %v1671 = vmul.f32 %v1656, %v1669
        %v1672 = vmul.f32 %v1661, %v1669
        %v1673 = vmul.f32 %v1666, %v1669
        %v1674 = vld [vmem:[%s6] sm:$0xff]
        %v1675 = vld [vmem:[%s6 + $0x8] sm:$0xff]
        %v1676 = vld [vmem:[%s6 + $0x10] sm:$0xff]
        %v1677 = vld [vmem:[%s6 + $0x18] sm:$0xff]
        %v1678 = vld [vmem:[%s7] sm:$0xff]
        %v1679 = vld [vmem:[%s7 + $0x8] sm:$0xff]
        %v1680 = vld [vmem:[%s7 + $0x10] sm:$0xff]
        %v1681 = vld [vmem:[%s7 + $0x18] sm:$0xff]
        %1683 = vset.pattern.permute.xlu0 0
        %1684 = vperm.xlu0 %1683, %v1678
        %v1685 = vpop.permute.xlu0 %1684
        %1688 = vset.pattern.permute.xlu0 0
        %1689 = vperm.xlu0 %1688, %v1679
        %v1690 = vpop.permute.xlu0 %1689
        %1693 = vset.pattern.permute.xlu0 0
        %1694 = vperm.xlu0 %1693, %v1680
        %v1695 = vpop.permute.xlu0 %1694
        %1698 = vset.pattern.permute.xlu0 0
        %1699 = vperm.xlu0 %1698, %v1681
        %v1700 = vpop.permute.xlu0 %1699
        %v1703 = vsel %vm915, %v1674, 0
        %v1706 = vsel %vm915, %v1675, 0
        %v1709 = vsel %vm915, %v1676, 0
        %v1712 = vsel %vm915, %v1677, 0
        %1714 = vmatprep.subr.mxu0 0.0
        %1715 = vmatpush1.msra.mxu0 %v1670
        %1716 = vmatprep.subr.mxu0 0.0
        %1717 = vmatpush1.msra.mxu0 %v1671
        %1718 = vmatprep.subr.mxu0 0.0
        %1719 = vmatpush1.msra.mxu0 %v1672
        %1720 = vmatprep.subr.mxu0 0.0
        %1721 = vmatpush1.msra.mxu0 %v1673
        %1722 = vmatprep.subr.mxu0 0.0
        %1723 = vmatpush1.msra.mxu0 0.0
        %1724 = vmatprep.subr.mxu0 0.0
        %1725 = vmatpush1.msra.mxu0 0.0
        %1726 = vmatprep.subr.mxu0 0.0
        %1727 = vmatpush1.msra.mxu0 0.0
        %1728 = vmatprep.subr.mxu0 0.0
        %1729 = vmatpush1.msra.mxu0 0.0
        %1730 = vmatprep.subr.mxu0 0.0
        %1731 = vmatpush1.msra.mxu0 0.0
        %1732 = vmatprep.subr.mxu0 0.0
        %1733 = vmatpush1.msra.mxu0 0.0
        %1734 = vmatprep.subr.mxu0 0.0
        %1735 = vmatpush1.msra.mxu0 0.0
        %1736 = vmatprep.subr.mxu0 0.0
        %1737 = vmatpush1.msra.mxu0 0.0
        %1738 = vmatprep.subr.mxu0 0.0
        %1739 = vmatpush1.msra.mxu0 0.0
        %1740 = vmatprep.subr.mxu0 0.0
        %1741 = vmatpush1.msra.mxu0 0.0
        %1742 = vmatprep.subr.mxu0 0.0
        %1743 = vmatpush1.msra.mxu0 0.0
        %1744 = vmatprep.subr.mxu0 0.0
        %1745 = vmatpush1.msra.mxu0 0.0
        %1746 = vmatprep.subr.mxu0 0.0
        %1747 = vmatpush1.msra.mxu0 0.0
        %1748 = vmatprep.subr.mxu0 0.0
        %1749 = vmatpush1.msra.mxu0 0.0
        %1750 = vmatprep.subr.mxu0 0.0
        %1751 = vmatpush1.msra.mxu0 0.0
        %1752 = vmatprep.subr.mxu0 0.0
        %1753 = vmatpush1.msra.mxu0 0.0
        %1754 = vmatprep.subr.mxu0 0.0
        %1755 = vmatpush1.msra.mxu0 0.0
        %1756 = vmatprep.subr.mxu0 0.0
        %1757 = vmatpush1.msra.mxu0 0.0
        %1758 = vmatprep.subr.mxu0 0.0
        %1759 = vmatpush1.msra.mxu0 0.0
        %1760 = vmatprep.subr.mxu0 0.0
        %1761 = vmatpush1.msra.mxu0 0.0
        %1762 = vmatprep.subr.mxu0 0.0
        %1763 = vmatpush1.msra.mxu0 0.0
        %1764 = vmatprep.subr.mxu0 0.0
        %1765 = vmatpush1.msra.mxu0 0.0
        %1766 = vmatprep.subr.mxu0 0.0
        %1767 = vmatpush1.msra.mxu0 0.0
        %1768 = vmatprep.subr.mxu0 0.0
        %1769 = vmatpush1.msra.mxu0 0.0
        %1770 = vmatprep.subr.mxu0 0.0
        %1771 = vmatpush1.msra.mxu0 0.0
        %1772 = vmatprep.subr.mxu0 0.0
        %1773 = vmatpush1.msra.mxu0 0.0
        %1774 = vmatprep.subr.mxu0 0.0
        %1775 = vmatpush1.msra.mxu0 0.0
        %1776 = vmatprep.subr.mxu0 0.0
        %1777 = vmatpush1.msra.mxu0 0.0
        %1778 = vmatprep.mubr.f32.mxu0 0.0
        %1779 = vmatmul.mubr.f32.gmra.mrb[0].mxu0 %v1703
        %v1780 = vpop.f32.mrb[0].mxu0
        %v1781 = vadd.f32 %v1685, %v1780
        %v1782 = vpop.f32.mrb[0].mxu0
        %1783 = vmatprep.mubr.f32.mxu0 0.0
        %1784 = vmatmul.mubr.f32.gmra.mrb[0].mxu0 %v1706
        %v1785 = vpop.f32.mrb[0].mxu0
        %v1786 = vadd.f32 %v1690, %v1785
        %v1787 = vpop.f32.mrb[0].mxu0
        %1788 = vmatprep.mubr.f32.mxu0 0.0
        %1789 = vmatmul.mubr.f32.gmra.mrb[0].mxu0 %v1709
        %v1790 = vpop.f32.mrb[0].mxu0
        %v1791 = vadd.f32 %v1695, %v1790
        %v1792 = vpop.f32.mrb[0].mxu0
        %1793 = vmatprep.mubr.f32.mxu0 0.0
        %1794 = vmatmul.mubr.f32.gmra.mrb[0].mxu0 %v1712
        %v1795 = vpop.f32.mrb[0].mxu0
        %v1796 = vadd.f32 %v1700, %v1795
        %v1797 = vpop.f32.mrb[0].mxu0
        %1798 = vdwg.mxu0
        %v1799 = vadd.f32 %v1781, %v827
        %v1800 = vadd.f32 %v1786, %v828
        %v1801 = vadd.f32 %v1791, %v829
        %v1802 = vadd.f32 %v1796, %v830
        %1803 = vst [vmem:[%s312] sm:$0xff] %v1799
        %1804 = vst [vmem:[%s312 + $0x8] sm:$0xff] %v1800
        %1805 = vst [vmem:[%s312 + $0x10] sm:$0xff] %v1801
        %1806 = vst [vmem:[%s312 + $0x18] sm:$0xff] %v1802
        %s1807 = sand.u32 %s217, 1
        %s1808 = scalar_lea.sflag [#allocation7], %s1807
        %s1809 = sand.u32 %s217, 1
        %s1810 = smul.addr %s1809, 32
        %s1811 = scalar_lea.vmem [#allocation6], %s1810
        // Predicated region
        $region57: #{tpu_custom_call.1} parent=51 // pred_check
          %p1812 = pneg %p227
        $region58: #{tpu_custom_call.1} parent=51 // pred_check_branch
          %1814 = sbr.rel (%p1812) target = $region60
        $region59: #{tpu_custom_call.1} parent=51 // pred_region
          %s1816 = ssub.s32 512, 512
          %1817 = vsyncadd %s1808, %s1816
          %s1818 = smul.addr %s26, 8
          %s1819 = sadd.s32 %s27, %s1818
          %s1820 = smul.addr %s1819, 128
          %s1821 = scalar_lea.hbm %s8, %s1820
          %s1822 = sshll.u32 %s1811, 4
          %s1823 = int_to_ptr.vmem [resolvable:$true] %s1822
          %1828 = dma.vmem_to_hbm [thread:$0]  %s1823, 512, %s1821, %s1808, 128, 256, 8
        $region60: #{tpu_custom_call.1} parent=51 // pred_fallthru
          _
      $region52: #{tpu_custom_call.1} parent=5 // pred_fallthru
        _
      %p1829 = scmp.le.s32.totalorder 2, %s17
      // Predicated region
      $region61: #{tpu_custom_call.1} parent=5 // pred_check
        %p1830 = pneg %p1829
      $region62: #{tpu_custom_call.1} parent=5 // pred_check_branch
        %1832 = sbr.rel (%p1830) target = $region64
      $region63: #{tpu_custom_call.1} parent=5 // pred_region
        %s1833 = ssub.s32 %s17, 2
        // Predicated region
        $region65: #{tpu_custom_call.1} parent=63 // pred_check
          %p1834 = pneg %p233
        $region66: #{tpu_custom_call.1} parent=63 // pred_check_branch
          %1836 = sbr.rel (%p1834) target = $region68
        $region67: #{tpu_custom_call.1} parent=63 // pred_region
          %s1837 = sand.u32 %s218, 1
          %s1838 = scalar_lea.sflag [#allocation7], %s1837
          %s1839 = sand.u32 %s218, 1
          %s1840 = smul.addr %s1839, 32
          %s1841 = scalar_lea.vmem [#allocation6], %s1840
          %1842 = dma.done %s1838, 512
        $region68: #{tpu_custom_call.1} parent=63 // pred_fallthru
          _
      $region64: #{tpu_custom_call.1} parent=5 // pred_fallthru
        _
    $region6: #{tpu_custom_call.1} parent=1 // loop_footer
      %s21 = sadd.s32 1, %s17
    $region7: #{tpu_custom_call.1} parent=1 // loop_footer_branch
      %16 = sbr.rel target = $region3
    $region8: #{tpu_custom_call.1} parent=1 // loop_exit
      _
    %1843 = vsyncpa [#allocation7], 1
    %s1844 = scalar_lea.sflag [#allocation7], 1
    %1845 = vsyncpa %s1844, 1

</llo_original>
